<compile_context>
chip_gen: v7x
topology: tpu7x:2x2x1
jax: 0.10.0
libtpu: 0.0.40
codegen_flags: <defaults>
</compile_context>

<pallas_src>
import functools
import math

import jax
import jax.numpy as jnp
from jax.experimental import pallas as pl
from jax.experimental.pallas import tpu as pltpu

_LANE = 256          # tile granularity: full 256-wide MXU pass on v6e/v7x, 2x128 lanes
_MAX_TILE_B = 4096   # cap on batch tile (per-step overhead already well amortized)


def _device_kind():
    try:
        return jax.devices()[0].device_kind.lower()
    except Exception:
        return ""


def _use_bf16_activations():
    # v6e / v7x have bf16 VPU/EUP paths (tanh is the binding unit); v5e and
    # older generations must stay f32.
    kind = _device_kind()
    return any(tag in kind for tag in ("v6", "v7"))


def _num_tensorcores():
    # v7x has 2 TensorCores per chip sharing a "parallel" grid axis; v5e/v6e
    # have a single TC.
    return 2 if "v7" in _device_kind() else 1


def _choose_tiling(n_batch, num_cores):
    """Adaptive batch tile: one tile per core for small batches, large
    lane-aligned tiles (grid a multiple of num_cores) for big batches."""
    tile_b = pl.cdiv(n_batch, num_cores * _LANE) * _LANE
    tile_b = max(_LANE, min(tile_b, _MAX_TILE_B))
    assert tile_b % 128 == 0, "batch tile must be a multiple of 128 lanes"
    grid_n = pl.cdiv(n_batch, tile_b)
    if grid_n % num_cores:
        grid_n += num_cores - (grid_n % num_cores)
    return tile_b, grid_n, grid_n * tile_b


def _pinn_kernel(xaT_ref, w1a_ref, w2_ref, b2_ref, w3_ref, o_ref, *, act_dtype):
    # xaT_ref: (4, TB)   rows = [x, y, t, 1]; batch on the lane (last) dim.
    # w1a_ref: (64, 4)   = [W1^T | b1]  (layer-1 bias folded into the matmul)
    # w2_ref : (64, 64)  (act_dtype)    b2_ref: (64, 1)  (f32)
    # w3_ref : (1, 64)   (act_dtype)
    # o_ref  : (1, TB)   (b3 folded in the wrapper)
    xaT = xaT_ref[...]
    h1p = jnp.dot(w1a_ref[...], xaT, preferred_element_type=jnp.float32)
    h1 = jnp.tanh(h1p.astype(act_dtype))
    h2p = jnp.dot(w2_ref[...], h1, preferred_element_type=jnp.float32) + b2_ref[...]
    h2 = jnp.tanh(h2p.astype(act_dtype))
    out = jnp.dot(w3_ref[...], h2, preferred_element_type=jnp.float32)
    o_ref[...] = out.astype(o_ref.dtype)


def pinn_forward(x, params):
    """x: (n_batch, 3) float32 -> (n_batch, 1) float32.  Run under jit so the
    layout prep (transpose / pad / concat) fuses with the caller's program."""
    w1, b1, w2, b2, w3, b3 = params
    n_batch = x.shape[0]

    num_cores = _num_tensorcores()
    use_bf16 = _use_bf16_activations()
    act_dtype = jnp.bfloat16 if use_bf16 else jnp.float32
    tile_b, grid_n, n_pad = _choose_tiling(n_batch, num_cores)

    # Feature-major, bias-augmented input (4, n_pad): ones row carries b1.
    xaT = jnp.concatenate([x.T, jnp.ones((1, n_batch), x.dtype)], axis=0)
    if n_pad != n_batch:
        xaT = jnp.pad(xaT, ((0, 0), (0, n_pad - n_batch)))

    w1a = jnp.concatenate([w1.T, b1.reshape(-1, 1)], axis=1)  # (64, 4) f32
    w2t = w2.T.astype(act_dtype)                              # (64, 64)
    b2c = b2.reshape(-1, 1)                                   # (64, 1) f32
    w3t = w3.T.astype(act_dtype)                              # (1, 64)

    # Advisory cost: kernel is tanh/EUP-bound, not MXU-bound.
    flops = 2 * n_pad * (4 * 64 + 64 * 64 + 64 * 1)
    transcendentals = 2 * 64 * n_pad
    bytes_accessed = 4 * (4 * n_pad + n_pad) + 4 * (w1a.size + b2c.size) \
        + jnp.dtype(act_dtype).itemsize * (w2t.size + w3t.size)

    # Explicit VMEM budget: double-buffered I/O tiles + intermediates + weights,
    # generous headroom, clamped to v7x's 64 MiB physical ceiling.
    itm = jnp.dtype(act_dtype).itemsize
    footprint = (2 * (4 * tile_b * 4) + 2 * (tile_b * 4)
                 + 2 * 64 * tile_b * itm
                 + 4 * (w1a.size + b2c.size) + itm * (w2t.size + w3t.size))
    vmem_limit = int(min(64 * 2**20, max(32 * 2**20, 4 * footprint)))

    def _full(shape):
        return pl.BlockSpec(shape, lambda i: (0, 0))

    out_t = pl.pallas_call(
        functools.partial(_pinn_kernel, act_dtype=act_dtype),
        out_shape=jax.ShapeDtypeStruct((1, n_pad), jnp.float32),
        grid_spec=pltpu.PrefetchScalarGridSpec(
            num_scalar_prefetch=0,
            grid=(grid_n,),
            in_specs=[
                # Lane-dense batch tile (batch on the lane dim).
                pl.BlockSpec((4, tile_b), lambda i: (0, i)),
                _full(w1a.shape),
                _full(w2t.shape),
                _full(b2c.shape),
                _full(w3t.shape),
            ],
            # Lane-dense output tile -> unmasked full-lane stores.
            out_specs=pl.BlockSpec((1, tile_b), lambda i: (0, i)),
        ),
        compiler_params=pltpu.CompilerParams(
            dimension_semantics=("parallel",),
            vmem_limit_bytes=vmem_limit,
        ),
        cost_estimate=pl.CostEstimate(
            flops=flops,
            transcendentals=transcendentals,
            bytes_accessed=int(bytes_accessed),
        ),
    )(xaT, w1a, w2t, b2c, w3t)

    # (1, n_pad) -> (n_batch, 1); fold the final bias here (scalar add).
    return out_t.reshape(n_pad, 1)[:n_batch] + b3.reshape(1, 1)


def init_params(key):
    """Deterministic init mimicking PyTorch's default Linear init
    (uniform in +/- 1/sqrt(fan_in)).  Weights stored as (fan_in, fan_out)."""
    sizes = [(3, 64), (64, 64), (64, 1)]
    params = []
    keys = jax.random.split(key, 2 * len(sizes))
    for idx, (fan_in, fan_out) in enumerate(sizes):
        bound = 1.0 / math.sqrt(fan_in)
        w = jax.random.uniform(
            keys[2 * idx], (fan_in, fan_out), jnp.float32, -bound, bound
        )
        b = jax.random.uniform(
            keys[2 * idx + 1], (1, fan_out), jnp.float32, -bound, bound
        )
        params.extend([w, b])
    return tuple(params)


def reference_forward(x, params):
    w1, b1, w2, b2, w3, b3 = params
    h1 = jnp.tanh(x @ w1 + b1)
    h2 = jnp.tanh(h1 @ w2 + b2)
    return h2 @ w3 + b3


if __name__ == "__main__":
    key = jax.random.PRNGKey(0)
    k_x, k_p = jax.random.split(key)

    params = init_params(k_p)
    fwd = jax.jit(pinn_forward)

    # bf16-tanh path on v6e/v7x is a deliberate precision trade -> looser check.
    use_bf16 = _use_bf16_activations()
    atol = rtol = 3e-2 if use_bf16 else 1e-5

    # Main case: 1024 collocation points (grid=1 on v5e/v6e, grid=2 on v7x).
    n_batch = 1024
    x = jax.random.normal(k_x, (n_batch, 3), jnp.float32)
    out = jax.block_until_ready(fwd(x, params))
    ref = reference_forward(x, params)
    assert out.shape == (n_batch, 1), out.shape
    assert jnp.allclose(out, ref, atol=atol, rtol=rtol), "mismatch vs reference"

    # Ragged batch case (exercises adaptive tiling + wrapper padding/slice).
    n_small = 300
    x_small = jax.random.normal(k_x, (n_small, 3), jnp.float32)
    out_small = jax.block_until_ready(fwd(x_small, params))
    ref_small = reference_forward(x_small, params)
    assert out_small.shape == (n_small, 1), out_small.shape
    assert jnp.allclose(out_small, ref_small, atol=atol, rtol=rtol), "ragged mismatch"

    print("KERNEL_OK")
</pallas_src>

<mosaic_0001>
module attributes {stable_mosaic.version = 11 : i64} {
  func.func @_pinn_kernel(%arg0: i32, %arg1: memref<4x1024xf32, #tpu.memory_space<vmem>>, %arg2: memref<64x4xf32, #tpu.memory_space<vmem>>, %arg3: memref<64x64xf32, #tpu.memory_space<vmem>>, %arg4: memref<64x1xf32, #tpu.memory_space<vmem>>, %arg5: memref<1x64xf32, #tpu.memory_space<vmem>>, %arg6: memref<1x1024xf32, #tpu.memory_space<vmem>>) attributes {dimension_semantics = [#tpu.dimension_semantics<parallel>], iteration_bounds = array<i64: 1>, scalar_prefetch = 0 : i64, scratch_operands = 0 : i64, tpu.core_type = #tpu.core_type<tc>, window_params = [{transform_indices = @transform_0, window_bounds = array<i64: 4, 1024>}, {pipeline_mode = #tpu.pipeline_mode<synchronous>, transform_indices = @transform_1, window_bounds = array<i64: 64, 4>}, {pipeline_mode = #tpu.pipeline_mode<synchronous>, transform_indices = @transform_2, window_bounds = array<i64: 64, 64>}, {pipeline_mode = #tpu.pipeline_mode<synchronous>, transform_indices = @transform_3, window_bounds = array<i64: 64, 1>}, {pipeline_mode = #tpu.pipeline_mode<synchronous>, transform_indices = @transform_4, window_bounds = array<i64: 1, 64>}, {transform_indices = @transform_5, window_bounds = array<i64: 1, 1024>}]} {
    %c0 = arith.constant 0 : index
    %c0_0 = arith.constant 0 : index
    %0 = vector.load %arg1[%c0, %c0_0] : memref<4x1024xf32, #tpu.memory_space<vmem>>, vector<4x1024xf32>
    %c0_1 = arith.constant 0 : index
    %c0_2 = arith.constant 0 : index
    %1 = vector.load %arg2[%c0_1, %c0_2] : memref<64x4xf32, #tpu.memory_space<vmem>>, vector<64x4xf32>
    %cst = arith.constant dense<0.000000e+00> : vector<64x1024xf32>
    %2 = tpu.matmul %1, %0, %cst {dimension_numbers = #tpu.dot_dimension_numbers<[1], [0], [0], [1], [0, 0, 1, 1], [], []>} : vector<64x4xf32>, vector<4x1024xf32>, vector<64x1024xf32> -> vector<64x1024xf32>
    %3 = math.tanh %2 : vector<64x1024xf32>
    %c0_3 = arith.constant 0 : index
    %c0_4 = arith.constant 0 : index
    %4 = vector.load %arg3[%c0_3, %c0_4] : memref<64x64xf32, #tpu.memory_space<vmem>>, vector<64x64xf32>
    %cst_5 = arith.constant dense<0.000000e+00> : vector<64x1024xf32>
    %5 = tpu.matmul %4, %3, %cst_5 {dimension_numbers = #tpu.dot_dimension_numbers<[1], [0], [0], [1], [0, 0, 1, 1], [], []>} : vector<64x64xf32>, vector<64x1024xf32>, vector<64x1024xf32> -> vector<64x1024xf32>
    %c0_6 = arith.constant 0 : index
    %c0_7 = arith.constant 0 : index
    %6 = vector.load %arg4[%c0_6, %c0_7] : memref<64x1xf32, #tpu.memory_space<vmem>>, vector<64x1xf32>
    %7 = vector.broadcast %6 : vector<64x1xf32> to vector<64x1024xf32>
    %8 = arith.addf %5, %7 : vector<64x1024xf32>
    %9 = math.tanh %8 : vector<64x1024xf32>
    %c0_8 = arith.constant 0 : index
    %c0_9 = arith.constant 0 : index
    %10 = vector.load %arg5[%c0_8, %c0_9] : memref<1x64xf32, #tpu.memory_space<vmem>>, vector<1x64xf32>
    %cst_10 = arith.constant dense<0.000000e+00> : vector<1x1024xf32>
    %11 = tpu.matmul %10, %9, %cst_10 {dimension_numbers = #tpu.dot_dimension_numbers<[1], [0], [0], [1], [0, 0, 1, 1], [], []>} : vector<1x64xf32>, vector<64x1024xf32>, vector<1x1024xf32> -> vector<1x1024xf32>
    %c0_11 = arith.constant 0 : index
    %c0_12 = arith.constant 0 : index
    %12 = vector.load %arg6[%c0_11, %c0_12] : memref<1x1024xf32, #tpu.memory_space<vmem>>, vector<1x1024xf32>
    tpu.vector_store %arg6[%c0_11, %c0_12], %11 {strides = array<i32>} : memref<1x1024xf32, #tpu.memory_space<vmem>>, vector<1x1024xf32>,
    return
  }
  func.func @transform_0(%arg0: i32) -> (i32, i32) {
    %c0_i32 = arith.constant 0 : i32
    %c0_i32_0 = arith.constant 0 : i32
    return %c0_i32, %arg0 : i32, i32
  }
  func.func @transform_1(%arg0: i32) -> (i32, i32) {
    %c0_i32 = arith.constant 0 : i32
    %c0_i32_0 = arith.constant 0 : i32
    %c0_i32_1 = arith.constant 0 : i32
    return %c0_i32, %c0_i32_0 : i32, i32
  }
  func.func @transform_2(%arg0: i32) -> (i32, i32) {
    %c0_i32 = arith.constant 0 : i32
    %c0_i32_0 = arith.constant 0 : i32
    %c0_i32_1 = arith.constant 0 : i32
    return %c0_i32, %c0_i32_0 : i32, i32
  }
  func.func @transform_3(%arg0: i32) -> (i32, i32) {
    %c0_i32 = arith.constant 0 : i32
    %c0_i32_0 = arith.constant 0 : i32
    %c0_i32_1 = arith.constant 0 : i32
    return %c0_i32, %c0_i32_0 : i32, i32
  }
  func.func @transform_4(%arg0: i32) -> (i32, i32) {
    %c0_i32 = arith.constant 0 : i32
    %c0_i32_0 = arith.constant 0 : i32
    %c0_i32_1 = arith.constant 0 : i32
    return %c0_i32, %c0_i32_0 : i32, i32
  }
  func.func @transform_5(%arg0: i32) -> (i32, i32) {
    %c0_i32 = arith.constant 0 : i32
    %c0_i32_0 = arith.constant 0 : i32
    return %c0_i32, %arg0 : i32, i32
  }
}

</mosaic_0001>

<llo_original>
// kernel: pinn_forward.1
$region0: #{pinn_forward.1}
  #allocation0 [shape = 'u32[]', space=smem, size = 0x4, offset = 0x4, fixed_abs, tag = 'smem constant byte address 0x4 - core index']
  #allocation1 [shape = 'u32[144,128]{1,0:T(1,128)}', space=vmem, size = 0x12000, scoped, tag = 'internal scratch']
  %s0 = inlined_call_operand.vmem [shape: f32[4,1024], index: 0, kind: input, shape index: {}]
  %s1 = inlined_call_operand.vmem [shape: f32[64,4], index: 1, kind: input, shape index: {}]
  %s2 = inlined_call_operand.vmem [shape: f32[64,64], index: 2, kind: input, shape index: {}]
  %s3 = inlined_call_operand.vmem [shape: f32[64,1], index: 3, kind: input, shape index: {}]
  %s4 = inlined_call_operand.vmem [shape: f32[1,64], index: 4, kind: input, shape index: {}]
  %s5 = inlined_call_operand.vmem [shape: f32[1,1024], index: 5, kind: output, shape index: {}]
  %s6 = sld [smem:[#allocation0]]
  $region30: #{pinn_forward.1} parent=0
    _
  %s8 = ssub.s32 1, %s6
  %s9 = scalar_select 0, %s8, %s6
  // Predicated region
  $region2: #{pinn_forward.1} parent=0 // pred_check
    _
  $region3: #{pinn_forward.1} parent=0 // pred_check_branch
    %11 = sbr.rel (0) target = $region5
  $region4: #{pinn_forward.1} parent=0 // pred_region
    _
  $region5: #{pinn_forward.1} parent=0 // pred_fallthru
    _
  // Predicated region
  $region6: #{pinn_forward.1} parent=0 // pred_check
    _
  $region7: #{pinn_forward.1} parent=0 // pred_check_branch
    %13 = sbr.rel (0) target = $region9
  $region8: #{pinn_forward.1} parent=0 // pred_region
    _
  $region9: #{pinn_forward.1} parent=0 // pred_fallthru
    _
  // Predicated region
  $region10: #{pinn_forward.1} parent=0 // pred_check
    _
  $region11: #{pinn_forward.1} parent=0 // pred_check_branch
    %15 = sbr.rel (0) target = $region13
  $region12: #{pinn_forward.1} parent=0 // pred_region
    _
  $region13: #{pinn_forward.1} parent=0 // pred_fallthru
    _
  // Predicated region
  $region14: #{pinn_forward.1} parent=0 // pred_check
    _
  $region15: #{pinn_forward.1} parent=0 // pred_check_branch
    %17 = sbr.rel (0) target = $region17
  $region16: #{pinn_forward.1} parent=0 // pred_region
    _
  $region17: #{pinn_forward.1} parent=0 // pred_fallthru
    _
  // Predicated region
  $region18: #{pinn_forward.1} parent=0 // pred_check
    _
  $region19: #{pinn_forward.1} parent=0 // pred_check_branch
    %19 = sbr.rel (0) target = $region21
  $region20: #{pinn_forward.1} parent=0 // pred_region
    _
  $region21: #{pinn_forward.1} parent=0 // pred_fallthru
    _
  %v20 = vld [vmem:[%s0] sm:$0xff]
  %v21 = vld [vmem:[%s0 + $0x8] sm:$0xff]
  %v22 = vld [vmem:[%s0 + $0x10] sm:$0xff]
  %v23 = vld [vmem:[%s0 + $0x18] sm:$0xff]
  %v24 = vld [vmem:[%s1] sm:$0xff]
  %v25 = vld [vmem:[%s1 + $0x8] sm:$0xff]
  %v26 = vld [vmem:[%s1 + $0x10] sm:$0xff]
  %v27 = vld [vmem:[%s1 + $0x18] sm:$0xff]
  %v28 = vld [vmem:[%s1 + $0x20] sm:$0xff]
  %v29 = vld [vmem:[%s1 + $0x28] sm:$0xff]
  %v30 = vld [vmem:[%s1 + $0x30] sm:$0xff]
  %v31 = vld [vmem:[%s1 + $0x38] sm:$0xff]
  %v36 = vcombine.high %v20, %v20
  %v37 = vcombine.high %v21, %v21
  %v38 = vcombine.high %v22, %v22
  %v39 = vcombine.high %v23, %v23
  %vm40 = vcmask 31744
  %v42 = vsel %vm40, %v24, 0
  %v45 = vsel %vm40, %v25, 0
  %v48 = vsel %vm40, %v26, 0
  %v51 = vsel %vm40, %v27, 0
  %v54 = vsel %vm40, %v28, 0
  %v57 = vsel %vm40, %v29, 0
  %v60 = vsel %vm40, %v30, 0
  %v63 = vsel %vm40, %v31, 0
  %vm65 = vcmask 1043456
  %v66 = vsel %vm65, %v20, 0
  %v68 = vsel %vm65, %v36, 0
  %v70 = vsel %vm65, %v21, 0
  %v72 = vsel %vm65, %v37, 0
  %v74 = vsel %vm65, %v22, 0
  %v76 = vsel %vm65, %v38, 0
  %v78 = vsel %vm65, %v23, 0
  %v80 = vsel %vm65, %v39, 0
  %82 = vmatprep.subr.mxu0 %v68
  %83 = vmatpush1.msra.mxu0 %v66
  %84 = vmatprep.subr.mxu0 0.0
  %85 = vmatpush1.msra.mxu0 0.0
  %86 = vmatprep.subr.mxu0 0.0
  %87 = vmatpush1.msra.mxu0 0.0
  %88 = vmatprep.subr.mxu0 0.0
  %89 = vmatpush1.msra.mxu0 0.0
  %90 = vmatprep.subr.mxu0 0.0
  %91 = vmatpush1.msra.mxu0 0.0
  %92 = vmatprep.subr.mxu0 0.0
  %93 = vmatpush1.msra.mxu0 0.0
  %94 = vmatprep.subr.mxu0 0.0
  %95 = vmatpush1.msra.mxu0 0.0
  %96 = vmatprep.subr.mxu0 0.0
  %97 = vmatpush1.msra.mxu0 0.0
  %98 = vmatprep.subr.mxu0 0.0
  %99 = vmatpush1.msra.mxu0 0.0
  %100 = vmatprep.subr.mxu0 0.0
  %101 = vmatpush1.msra.mxu0 0.0
  %102 = vmatprep.subr.mxu0 0.0
  %103 = vmatpush1.msra.mxu0 0.0
  %104 = vmatprep.subr.mxu0 0.0
  %105 = vmatpush1.msra.mxu0 0.0
  %106 = vmatprep.subr.mxu0 0.0
  %107 = vmatpush1.msra.mxu0 0.0
  %108 = vmatprep.subr.mxu0 0.0
  %109 = vmatpush1.msra.mxu0 0.0
  %110 = vmatprep.subr.mxu0 0.0
  %111 = vmatpush1.msra.mxu0 0.0
  %112 = vmatprep.subr.mxu0 0.0
  %113 = vmatpush1.msra.mxu0 0.0
  %114 = vmatprep.subr.mxu0 0.0
  %115 = vmatpush1.msra.mxu0 0.0
  %116 = vmatprep.subr.mxu0 0.0
  %117 = vmatpush1.msra.mxu0 0.0
  %118 = vmatprep.subr.mxu0 0.0
  %119 = vmatpush1.msra.mxu0 0.0
  %120 = vmatprep.subr.mxu0 0.0
  %121 = vmatpush1.msra.mxu0 0.0
  %122 = vmatprep.subr.mxu0 0.0
  %123 = vmatpush1.msra.mxu0 0.0
  %124 = vmatprep.subr.mxu0 0.0
  %125 = vmatpush1.msra.mxu0 0.0
  %126 = vmatprep.subr.mxu0 0.0
  %127 = vmatpush1.msra.mxu0 0.0
  %128 = vmatprep.subr.mxu0 0.0
  %129 = vmatpush1.msra.mxu0 0.0
  %130 = vmatprep.subr.mxu0 0.0
  %131 = vmatpush1.msra.mxu0 0.0
  %132 = vmatprep.subr.mxu0 0.0
  %133 = vmatpush1.msra.mxu0 0.0
  %134 = vmatprep.subr.mxu0 0.0
  %135 = vmatpush1.msra.mxu0 0.0
  %136 = vmatprep.subr.mxu0 0.0
  %137 = vmatpush1.msra.mxu0 0.0
  %138 = vmatprep.subr.mxu0 0.0
  %139 = vmatpush1.msra.mxu0 0.0
  %140 = vmatprep.subr.mxu0 0.0
  %141 = vmatpush1.msra.mxu0 0.0
  %142 = vmatprep.subr.mxu0 0.0
  %143 = vmatpush1.msra.mxu0 0.0
  %144 = vmatprep.subr.mxu0 0.0
  %145 = vmatpush1.msra.mxu0 0.0
  %146 = vmatprep.mubr.f32.mxu0 0.0
  %147 = vmatmul.mubr.f32.gmra.mrb[0].mxu0 %v42
  %v148 = vpop.f32.mrb[0].mxu0
  %v149 = vadd.f32 0.0, %v148
  %v150 = vpop.f32.mrb[0].mxu0
  %v151 = vadd.f32 0.0, %v150
  %152 = vmatprep.mubr.f32.mxu0 0.0
  %153 = vmatmul.mubr.f32.gmra.mrb[0].mxu0 %v45
  %v154 = vpop.f32.mrb[0].mxu0
  %v155 = vadd.f32 0.0, %v154
  %v156 = vpop.f32.mrb[0].mxu0
  %v157 = vadd.f32 0.0, %v156
  %158 = vmatprep.mubr.f32.mxu0 0.0
  %159 = vmatmul.mubr.f32.gmra.mrb[0].mxu0 %v48
  %v160 = vpop.f32.mrb[0].mxu0
  %v161 = vadd.f32 0.0, %v160
  %v162 = vpop.f32.mrb[0].mxu0
  %v163 = vadd.f32 0.0, %v162
  %164 = vmatprep.mubr.f32.mxu0 0.0
  %165 = vmatmul.mubr.f32.gmra.mrb[0].mxu0 %v51
  %v166 = vpop.f32.mrb[0].mxu0
  %v167 = vadd.f32 0.0, %v166
  %v168 = vpop.f32.mrb[0].mxu0
  %v169 = vadd.f32 0.0, %v168
  %170 = vmatprep.mubr.f32.mxu0 0.0
  %171 = vmatmul.mubr.f32.gmra.mrb[0].mxu0 %v54
  %v172 = vpop.f32.mrb[0].mxu0
  %v173 = vadd.f32 0.0, %v172
  %v174 = vpop.f32.mrb[0].mxu0
  %v175 = vadd.f32 0.0, %v174
  %176 = vmatprep.mubr.f32.mxu0 0.0
  %177 = vmatmul.mubr.f32.gmra.mrb[0].mxu0 %v57
  %v178 = vpop.f32.mrb[0].mxu0
  %v179 = vadd.f32 0.0, %v178
  %v180 = vpop.f32.mrb[0].mxu0
  %v181 = vadd.f32 0.0, %v180
  %182 = vmatprep.mubr.f32.mxu0 0.0
  %183 = vmatmul.mubr.f32.gmra.mrb[0].mxu0 %v60
  %v184 = vpop.f32.mrb[0].mxu0
  %v185 = vadd.f32 0.0, %v184
  %v186 = vpop.f32.mrb[0].mxu0
  %v187 = vadd.f32 0.0, %v186
  %188 = vmatprep.mubr.f32.mxu0 0.0
  %189 = vmatmul.mubr.f32.gmra.mrb[0].mxu0 %v63
  %v190 = vpop.f32.mrb[0].mxu0
  %v191 = vadd.f32 0.0, %v190
  %v192 = vpop.f32.mrb[0].mxu0
  %v193 = vadd.f32 0.0, %v192
  %194 = vdwg.mxu0
  %195 = vmatprep.subr.mxu0 %v72
  %196 = vmatpush1.msra.mxu0 %v70
  %197 = vmatprep.subr.mxu0 0.0
  %198 = vmatpush1.msra.mxu0 0.0
  %199 = vmatprep.subr.mxu0 0.0
  %200 = vmatpush1.msra.mxu0 0.0
  %201 = vmatprep.subr.mxu0 0.0
  %202 = vmatpush1.msra.mxu0 0.0
  %203 = vmatprep.subr.mxu0 0.0
  %204 = vmatpush1.msra.mxu0 0.0
  %205 = vmatprep.subr.mxu0 0.0
  %206 = vmatpush1.msra.mxu0 0.0
  %207 = vmatprep.subr.mxu0 0.0
  %208 = vmatpush1.msra.mxu0 0.0
  %209 = vmatprep.subr.mxu0 0.0
  %210 = vmatpush1.msra.mxu0 0.0
  %211 = vmatprep.subr.mxu0 0.0
  %212 = vmatpush1.msra.mxu0 0.0
  %213 = vmatprep.subr.mxu0 0.0
  %214 = vmatpush1.msra.mxu0 0.0
  %215 = vmatprep.subr.mxu0 0.0
  %216 = vmatpush1.msra.mxu0 0.0
  %217 = vmatprep.subr.mxu0 0.0
  %218 = vmatpush1.msra.mxu0 0.0
  %219 = vmatprep.subr.mxu0 0.0
  %220 = vmatpush1.msra.mxu0 0.0
  %221 = vmatprep.subr.mxu0 0.0
  %222 = vmatpush1.msra.mxu0 0.0
  %223 = vmatprep.subr.mxu0 0.0
  %224 = vmatpush1.msra.mxu0 0.0
  %225 = vmatprep.subr.mxu0 0.0
  %226 = vmatpush1.msra.mxu0 0.0
  %227 = vmatprep.subr.mxu0 0.0
  %228 = vmatpush1.msra.mxu0 0.0
  %229 = vmatprep.subr.mxu0 0.0
  %230 = vmatpush1.msra.mxu0 0.0
  %231 = vmatprep.subr.mxu0 0.0
  %232 = vmatpush1.msra.mxu0 0.0
  %233 = vmatprep.subr.mxu0 0.0
  %234 = vmatpush1.msra.mxu0 0.0
  %235 = vmatprep.subr.mxu0 0.0
  %236 = vmatpush1.msra.mxu0 0.0
  %237 = vmatprep.subr.mxu0 0.0
  %238 = vmatpush1.msra.mxu0 0.0
  %239 = vmatprep.subr.mxu0 0.0
  %240 = vmatpush1.msra.mxu0 0.0
  %241 = vmatprep.subr.mxu0 0.0
  %242 = vmatpush1.msra.mxu0 0.0
  %243 = vmatprep.subr.mxu0 0.0
  %244 = vmatpush1.msra.mxu0 0.0
  %245 = vmatprep.subr.mxu0 0.0
  %246 = vmatpush1.msra.mxu0 0.0
  %247 = vmatprep.subr.mxu0 0.0
  %248 = vmatpush1.msra.mxu0 0.0
  %249 = vmatprep.subr.mxu0 0.0
  %250 = vmatpush1.msra.mxu0 0.0
  %251 = vmatprep.subr.mxu0 0.0
  %252 = vmatpush1.msra.mxu0 0.0
  %253 = vmatprep.subr.mxu0 0.0
  %254 = vmatpush1.msra.mxu0 0.0
  %255 = vmatprep.subr.mxu0 0.0
  %256 = vmatpush1.msra.mxu0 0.0
  %257 = vmatprep.subr.mxu0 0.0
  %258 = vmatpush1.msra.mxu0 0.0
  %259 = vmatprep.mubr.f32.mxu0 0.0
  %260 = vmatmul.mubr.f32.gmra.mrb[0].mxu0 %v42
  %v261 = vpop.f32.mrb[0].mxu0
  %v262 = vadd.f32 0.0, %v261
  %v263 = vpop.f32.mrb[0].mxu0
  %v264 = vadd.f32 0.0, %v263
  %265 = vmatprep.mubr.f32.mxu0 0.0
  %266 = vmatmul.mubr.f32.gmra.mrb[0].mxu0 %v45
  %v267 = vpop.f32.mrb[0].mxu0
  %v268 = vadd.f32 0.0, %v267
  %v269 = vpop.f32.mrb[0].mxu0
  %v270 = vadd.f32 0.0, %v269
  %271 = vmatprep.mubr.f32.mxu0 0.0
  %272 = vmatmul.mubr.f32.gmra.mrb[0].mxu0 %v48
  %v273 = vpop.f32.mrb[0].mxu0
  %v274 = vadd.f32 0.0, %v273
  %v275 = vpop.f32.mrb[0].mxu0
  %v276 = vadd.f32 0.0, %v275
  %277 = vmatprep.mubr.f32.mxu0 0.0
  %278 = vmatmul.mubr.f32.gmra.mrb[0].mxu0 %v51
  %v279 = vpop.f32.mrb[0].mxu0
  %v280 = vadd.f32 0.0, %v279
  %v281 = vpop.f32.mrb[0].mxu0
  %v282 = vadd.f32 0.0, %v281
  %283 = vmatprep.mubr.f32.mxu0 0.0
  %284 = vmatmul.mubr.f32.gmra.mrb[0].mxu0 %v54
  %v285 = vpop.f32.mrb[0].mxu0
  %v286 = vadd.f32 0.0, %v285
  %v287 = vpop.f32.mrb[0].mxu0
  %v288 = vadd.f32 0.0, %v287
  %289 = vmatprep.mubr.f32.mxu0 0.0
  %290 = vmatmul.mubr.f32.gmra.mrb[0].mxu0 %v57
  %v291 = vpop.f32.mrb[0].mxu0
  %v292 = vadd.f32 0.0, %v291
  %v293 = vpop.f32.mrb[0].mxu0
  %v294 = vadd.f32 0.0, %v293
  %295 = vmatprep.mubr.f32.mxu0 0.0
  %296 = vmatmul.mubr.f32.gmra.mrb[0].mxu0 %v60
  %v297 = vpop.f32.mrb[0].mxu0
  %v298 = vadd.f32 0.0, %v297
  %v299 = vpop.f32.mrb[0].mxu0
  %v300 = vadd.f32 0.0, %v299
  %301 = vmatprep.mubr.f32.mxu0 0.0
  %302 = vmatmul.mubr.f32.gmra.mrb[0].mxu0 %v63
  %v303 = vpop.f32.mrb[0].mxu0
  %v304 = vadd.f32 0.0, %v303
  %v305 = vpop.f32.mrb[0].mxu0
  %v306 = vadd.f32 0.0, %v305
  %307 = vdwg.mxu0
  %308 = vmatprep.subr.mxu0 %v76
  %309 = vmatpush1.msra.mxu0 %v74
  %310 = vmatprep.subr.mxu0 0.0
  %311 = vmatpush1.msra.mxu0 0.0
  %312 = vmatprep.subr.mxu0 0.0
  %313 = vmatpush1.msra.mxu0 0.0
  %314 = vmatprep.subr.mxu0 0.0
  %315 = vmatpush1.msra.mxu0 0.0
  %316 = vmatprep.subr.mxu0 0.0
  %317 = vmatpush1.msra.mxu0 0.0
  %318 = vmatprep.subr.mxu0 0.0
  %319 = vmatpush1.msra.mxu0 0.0
  %320 = vmatprep.subr.mxu0 0.0
  %321 = vmatpush1.msra.mxu0 0.0
  %322 = vmatprep.subr.mxu0 0.0
  %323 = vmatpush1.msra.mxu0 0.0
  %324 = vmatprep.subr.mxu0 0.0
  %325 = vmatpush1.msra.mxu0 0.0
  %326 = vmatprep.subr.mxu0 0.0
  %327 = vmatpush1.msra.mxu0 0.0
  %328 = vmatprep.subr.mxu0 0.0
  %329 = vmatpush1.msra.mxu0 0.0
  %330 = vmatprep.subr.mxu0 0.0
  %331 = vmatpush1.msra.mxu0 0.0
  %332 = vmatprep.subr.mxu0 0.0
  %333 = vmatpush1.msra.mxu0 0.0
  %334 = vmatprep.subr.mxu0 0.0
  %335 = vmatpush1.msra.mxu0 0.0
  %336 = vmatprep.subr.mxu0 0.0
  %337 = vmatpush1.msra.mxu0 0.0
  %338 = vmatprep.subr.mxu0 0.0
  %339 = vmatpush1.msra.mxu0 0.0
  %340 = vmatprep.subr.mxu0 0.0
  %341 = vmatpush1.msra.mxu0 0.0
  %342 = vmatprep.subr.mxu0 0.0
  %343 = vmatpush1.msra.mxu0 0.0
  %344 = vmatprep.subr.mxu0 0.0
  %345 = vmatpush1.msra.mxu0 0.0
  %346 = vmatprep.subr.mxu0 0.0
  %347 = vmatpush1.msra.mxu0 0.0
  %348 = vmatprep.subr.mxu0 0.0
  %349 = vmatpush1.msra.mxu0 0.0
  %350 = vmatprep.subr.mxu0 0.0
  %351 = vmatpush1.msra.mxu0 0.0
  %352 = vmatprep.subr.mxu0 0.0
  %353 = vmatpush1.msra.mxu0 0.0
  %354 = vmatprep.subr.mxu0 0.0
  %355 = vmatpush1.msra.mxu0 0.0
  %356 = vmatprep.subr.mxu0 0.0
  %357 = vmatpush1.msra.mxu0 0.0
  %358 = vmatprep.subr.mxu0 0.0
  %359 = vmatpush1.msra.mxu0 0.0
  %360 = vmatprep.subr.mxu0 0.0
  %361 = vmatpush1.msra.mxu0 0.0
  %362 = vmatprep.subr.mxu0 0.0
  %363 = vmatpush1.msra.mxu0 0.0
  %364 = vmatprep.subr.mxu0 0.0
  %365 = vmatpush1.msra.mxu0 0.0
  %366 = vmatprep.subr.mxu0 0.0
  %367 = vmatpush1.msra.mxu0 0.0
  %368 = vmatprep.subr.mxu0 0.0
  %369 = vmatpush1.msra.mxu0 0.0
  %370 = vmatprep.subr.mxu0 0.0
  %371 = vmatpush1.msra.mxu0 0.0
  %372 = vmatprep.mubr.f32.mxu0 0.0
  %373 = vmatmul.mubr.f32.gmra.mrb[0].mxu0 %v42
  %v374 = vpop.f32.mrb[0].mxu0
  %v375 = vadd.f32 0.0, %v374
  %v376 = vpop.f32.mrb[0].mxu0
  %v377 = vadd.f32 0.0, %v376
  %378 = vmatprep.mubr.f32.mxu0 0.0
  %379 = vmatmul.mubr.f32.gmra.mrb[0].mxu0 %v45
  %v380 = vpop.f32.mrb[0].mxu0
  %v381 = vadd.f32 0.0, %v380
  %v382 = vpop.f32.mrb[0].mxu0
  %v383 = vadd.f32 0.0, %v382
  %384 = vmatprep.mubr.f32.mxu0 0.0
  %385 = vmatmul.mubr.f32.gmra.mrb[0].mxu0 %v48
  %v386 = vpop.f32.mrb[0].mxu0
  %v387 = vadd.f32 0.0, %v386
  %v388 = vpop.f32.mrb[0].mxu0
  %v389 = vadd.f32 0.0, %v388
  %390 = vmatprep.mubr.f32.mxu0 0.0
  %391 = vmatmul.mubr.f32.gmra.mrb[0].mxu0 %v51
  %v392 = vpop.f32.mrb[0].mxu0
  %v393 = vadd.f32 0.0, %v392
  %v394 = vpop.f32.mrb[0].mxu0
  %v395 = vadd.f32 0.0, %v394
  %396 = vmatprep.mubr.f32.mxu0 0.0
  %397 = vmatmul.mubr.f32.gmra.mrb[0].mxu0 %v54
  %v398 = vpop.f32.mrb[0].mxu0
  %v399 = vadd.f32 0.0, %v398
  %v400 = vpop.f32.mrb[0].mxu0
  %v401 = vadd.f32 0.0, %v400
  %402 = vmatprep.mubr.f32.mxu0 0.0
  %403 = vmatmul.mubr.f32.gmra.mrb[0].mxu0 %v57
  %v404 = vpop.f32.mrb[0].mxu0
  %v405 = vadd.f32 0.0, %v404
  %v406 = vpop.f32.mrb[0].mxu0
  %v407 = vadd.f32 0.0, %v406
  %408 = vmatprep.mubr.f32.mxu0 0.0
  %409 = vmatmul.mubr.f32.gmra.mrb[0].mxu0 %v60
  %v410 = vpop.f32.mrb[0].mxu0
  %v411 = vadd.f32 0.0, %v410
  %v412 = vpop.f32.mrb[0].mxu0
  %v413 = vadd.f32 0.0, %v412
  %414 = vmatprep.mubr.f32.mxu0 0.0
  %415 = vmatmul.mubr.f32.gmra.mrb[0].mxu0 %v63
  %v416 = vpop.f32.mrb[0].mxu0
  %v417 = vadd.f32 0.0, %v416
  %v418 = vpop.f32.mrb[0].mxu0
  %v419 = vadd.f32 0.0, %v418
  %420 = vdwg.mxu0
  %421 = vmatprep.subr.mxu0 %v80
  %422 = vmatpush1.msra.mxu0 %v78
  %423 = vmatprep.subr.mxu0 0.0
  %424 = vmatpush1.msra.mxu0 0.0
  %425 = vmatprep.subr.mxu0 0.0
  %426 = vmatpush1.msra.mxu0 0.0
  %427 = vmatprep.subr.mxu0 0.0
  %428 = vmatpush1.msra.mxu0 0.0
  %429 = vmatprep.subr.mxu0 0.0
  %430 = vmatpush1.msra.mxu0 0.0
  %431 = vmatprep.subr.mxu0 0.0
  %432 = vmatpush1.msra.mxu0 0.0
  %433 = vmatprep.subr.mxu0 0.0
  %434 = vmatpush1.msra.mxu0 0.0
  %435 = vmatprep.subr.mxu0 0.0
  %436 = vmatpush1.msra.mxu0 0.0
  %437 = vmatprep.subr.mxu0 0.0
  %438 = vmatpush1.msra.mxu0 0.0
  %439 = vmatprep.subr.mxu0 0.0
  %440 = vmatpush1.msra.mxu0 0.0
  %441 = vmatprep.subr.mxu0 0.0
  %442 = vmatpush1.msra.mxu0 0.0
  %443 = vmatprep.subr.mxu0 0.0
  %444 = vmatpush1.msra.mxu0 0.0
  %445 = vmatprep.subr.mxu0 0.0
  %446 = vmatpush1.msra.mxu0 0.0
  %447 = vmatprep.subr.mxu0 0.0
  %448 = vmatpush1.msra.mxu0 0.0
  %449 = vmatprep.subr.mxu0 0.0
  %450 = vmatpush1.msra.mxu0 0.0
  %451 = vmatprep.subr.mxu0 0.0
  %452 = vmatpush1.msra.mxu0 0.0
  %453 = vmatprep.subr.mxu0 0.0
  %454 = vmatpush1.msra.mxu0 0.0
  %455 = vmatprep.subr.mxu0 0.0
  %456 = vmatpush1.msra.mxu0 0.0
  %457 = vmatprep.subr.mxu0 0.0
  %458 = vmatpush1.msra.mxu0 0.0
  %459 = vmatprep.subr.mxu0 0.0
  %460 = vmatpush1.msra.mxu0 0.0
  %461 = vmatprep.subr.mxu0 0.0
  %462 = vmatpush1.msra.mxu0 0.0
  %463 = vmatprep.subr.mxu0 0.0
  %464 = vmatpush1.msra.mxu0 0.0
  %465 = vmatprep.subr.mxu0 0.0
  %466 = vmatpush1.msra.mxu0 0.0
  %467 = vmatprep.subr.mxu0 0.0
  %468 = vmatpush1.msra.mxu0 0.0
  %469 = vmatprep.subr.mxu0 0.0
  %470 = vmatpush1.msra.mxu0 0.0
  %471 = vmatprep.subr.mxu0 0.0
  %472 = vmatpush1.msra.mxu0 0.0
  %473 = vmatprep.subr.mxu0 0.0
  %474 = vmatpush1.msra.mxu0 0.0
  %475 = vmatprep.subr.mxu0 0.0
  %476 = vmatpush1.msra.mxu0 0.0
  %477 = vmatprep.subr.mxu0 0.0
  %478 = vmatpush1.msra.mxu0 0.0
  %479 = vmatprep.subr.mxu0 0.0
  %480 = vmatpush1.msra.mxu0 0.0
  %481 = vmatprep.subr.mxu0 0.0
  %482 = vmatpush1.msra.mxu0 0.0
  %483 = vmatprep.subr.mxu0 0.0
  %484 = vmatpush1.msra.mxu0 0.0
  %485 = vmatprep.mubr.f32.mxu0 0.0
  %486 = vmatmul.mubr.f32.gmra.mrb[0].mxu0 %v42
  %v487 = vpop.f32.mrb[0].mxu0
  %v488 = vadd.f32 0.0, %v487
  %v489 = vpop.f32.mrb[0].mxu0
  %v490 = vadd.f32 0.0, %v489
  %491 = vmatprep.mubr.f32.mxu0 0.0
  %492 = vmatmul.mubr.f32.gmra.mrb[0].mxu0 %v45
  %v493 = vpop.f32.mrb[0].mxu0
  %v494 = vadd.f32 0.0, %v493
  %v495 = vpop.f32.mrb[0].mxu0
  %v496 = vadd.f32 0.0, %v495
  %497 = vmatprep.mubr.f32.mxu0 0.0
  %498 = vmatmul.mubr.f32.gmra.mrb[0].mxu0 %v48
  %v499 = vpop.f32.mrb[0].mxu0
  %v500 = vadd.f32 0.0, %v499
  %v501 = vpop.f32.mrb[0].mxu0
  %v502 = vadd.f32 0.0, %v501
  %503 = vmatprep.mubr.f32.mxu0 0.0
  %504 = vmatmul.mubr.f32.gmra.mrb[0].mxu0 %v51
  %v505 = vpop.f32.mrb[0].mxu0
  %v506 = vadd.f32 0.0, %v505
  %v507 = vpop.f32.mrb[0].mxu0
  %v508 = vadd.f32 0.0, %v507
  %509 = vmatprep.mubr.f32.mxu0 0.0
  %510 = vmatmul.mubr.f32.gmra.mrb[0].mxu0 %v54
  %v511 = vpop.f32.mrb[0].mxu0
  %v512 = vadd.f32 0.0, %v511
  %v513 = vpop.f32.mrb[0].mxu0
  %v514 = vadd.f32 0.0, %v513
  %515 = vmatprep.mubr.f32.mxu0 0.0
  %516 = vmatmul.mubr.f32.gmra.mrb[0].mxu0 %v57
  %v517 = vpop.f32.mrb[0].mxu0
  %v518 = vadd.f32 0.0, %v517
  %v519 = vpop.f32.mrb[0].mxu0
  %v520 = vadd.f32 0.0, %v519
  %521 = vmatprep.mubr.f32.mxu0 0.0
  %522 = vmatmul.mubr.f32.gmra.mrb[0].mxu0 %v60
  %v523 = vpop.f32.mrb[0].mxu0
  %v524 = vadd.f32 0.0, %v523
  %v525 = vpop.f32.mrb[0].mxu0
  %v526 = vadd.f32 0.0, %v525
  %527 = vmatprep.mubr.f32.mxu0 0.0
  %528 = vmatmul.mubr.f32.gmra.mrb[0].mxu0 %v63
  %v529 = vpop.f32.mrb[0].mxu0
  %v530 = vadd.f32 0.0, %v529
  %v531 = vpop.f32.mrb[0].mxu0
  %v532 = vadd.f32 0.0, %v531
  %533 = vdwg.mxu0
  %v534 = vtanh.pop %v149
  %v535 = vtanh.pop %v151
  %v536 = vtanh.pop %v262
  %v537 = vtanh.pop %v264
  %v538 = vtanh.pop %v375
  %v539 = vtanh.pop %v377
  %v540 = vtanh.pop %v488
  %v541 = vtanh.pop %v490
  %v542 = vtanh.pop %v155
  %v543 = vtanh.pop %v157
  %v544 = vtanh.pop %v268
  %v545 = vtanh.pop %v270
  %v546 = vtanh.pop %v381
  %v547 = vtanh.pop %v383
  %v548 = vtanh.pop %v494
  %v549 = vtanh.pop %v496
  %v550 = vtanh.pop %v161
  %v551 = vtanh.pop %v163
  %v552 = vtanh.pop %v274
  %v553 = vtanh.pop %v276
  %v554 = vtanh.pop %v387
  %v555 = vtanh.pop %v389
  %v556 = vtanh.pop %v500
  %v557 = vtanh.pop %v502
  %v558 = vtanh.pop %v167
  %v559 = vtanh.pop %v169
  %v560 = vtanh.pop %v280
  %v561 = vtanh.pop %v282
  %v562 = vtanh.pop %v393
  %v563 = vtanh.pop %v395
  %v564 = vtanh.pop %v506
  %v565 = vtanh.pop %v508
  %v566 = vtanh.pop %v173
  %v567 = vtanh.pop %v175
  %v568 = vtanh.pop %v286
  %v569 = vtanh.pop %v288
  %v570 = vtanh.pop %v399
  %v571 = vtanh.pop %v401
  %v572 = vtanh.pop %v512
  %v573 = vtanh.pop %v514
  %v574 = vtanh.pop %v179
  %v575 = vtanh.pop %v181
  %v576 = vtanh.pop %v292
  %v577 = vtanh.pop %v294
  %v578 = vtanh.pop %v405
  %v579 = vtanh.pop %v407
  %v580 = vtanh.pop %v518
  %v581 = vtanh.pop %v520
  %v582 = vtanh.pop %v185
  %v583 = vtanh.pop %v187
  %v584 = vtanh.pop %v298
  %v585 = vtanh.pop %v300
  %v586 = vtanh.pop %v411
  %v587 = vtanh.pop %v413
  %v588 = vtanh.pop %v524
  %v589 = vtanh.pop %v526
  %v590 = vtanh.pop %v191
  %v591 = vtanh.pop %v193
  %v592 = vtanh.pop %v304
  %v593 = vtanh.pop %v306
  %v594 = vtanh.pop %v417
  %v595 = vtanh.pop %v419
  %v596 = vtanh.pop %v530
  %v597 = vtanh.pop %v532
  %v598 = vld [vmem:[%s2] sm:$0xff]
  %v599 = vld [vmem:[%s2 + $0x8] sm:$0xff]
  %v600 = vld [vmem:[%s2 + $0x10] sm:$0xff]
  %v601 = vld [vmem:[%s2 + $0x18] sm:$0xff]
  %v602 = vld [vmem:[%s2 + $0x20] sm:$0xff]
  %v603 = vld [vmem:[%s2 + $0x28] sm:$0xff]
  %v604 = vld [vmem:[%s2 + $0x30] sm:$0xff]
  %v605 = vld [vmem:[%s2 + $0x38] sm:$0xff]
  %v606 = vld [vmem:[%s3] sm:$0xff]
  %v607 = vld [vmem:[%s3 + $0x8] sm:$0xff]
  %v608 = vld [vmem:[%s3 + $0x10] sm:$0xff]
  %v609 = vld [vmem:[%s3 + $0x18] sm:$0xff]
  %v610 = vld [vmem:[%s3 + $0x20] sm:$0xff]
  %v611 = vld [vmem:[%s3 + $0x28] sm:$0xff]
  %v612 = vld [vmem:[%s3 + $0x30] sm:$0xff]
  %v613 = vld [vmem:[%s3 + $0x38] sm:$0xff]
  %615 = vset.pattern.permute.xlu0 0
  %616 = vperm.xlu0 %615, %v606
  %v617 = vpop.permute.xlu0 %616
  %620 = vset.pattern.permute.xlu0 0
  %621 = vperm.xlu0 %620, %v607
  %v622 = vpop.permute.xlu0 %621
  %625 = vset.pattern.permute.xlu0 0
  %626 = vperm.xlu0 %625, %v608
  %v627 = vpop.permute.xlu0 %626
  %630 = vset.pattern.permute.xlu0 0
  %631 = vperm.xlu0 %630, %v609
  %v632 = vpop.permute.xlu0 %631
  %635 = vset.pattern.permute.xlu0 0
  %636 = vperm.xlu0 %635, %v610
  %v637 = vpop.permute.xlu0 %636
  %640 = vset.pattern.permute.xlu0 0
  %641 = vperm.xlu0 %640, %v611
  %v642 = vpop.permute.xlu0 %641
  %645 = vset.pattern.permute.xlu0 0
  %646 = vperm.xlu0 %645, %v612
  %v647 = vpop.permute.xlu0 %646
  %650 = vset.pattern.permute.xlu0 0
  %651 = vperm.xlu0 %650, %v613
  %v652 = vpop.permute.xlu0 %651
  %vm654 = vcmask 523264
  %v656 = vsel %vm654, %v598, 0
  %v659 = vsel %vm654, %v599, 0
  %v662 = vsel %vm654, %v600, 0
  %v665 = vsel %vm654, %v601, 0
  %v668 = vsel %vm654, %v602, 0
  %v671 = vsel %vm654, %v603, 0
  %v674 = vsel %vm654, %v604, 0
  %v677 = vsel %vm654, %v605, 0
  %679 = vmatprep.subr.mxu0 %v535
  %680 = vmatpush1.msra.mxu0 %v534
  %681 = vmatprep.subr.mxu0 %v543
  %682 = vmatpush1.msra.mxu0 %v542
  %683 = vmatprep.subr.mxu0 %v551
  %684 = vmatpush1.msra.mxu0 %v550
  %685 = vmatprep.subr.mxu0 %v559
  %686 = vmatpush1.msra.mxu0 %v558
  %687 = vmatprep.subr.mxu0 %v567
  %688 = vmatpush1.msra.mxu0 %v566
  %689 = vmatprep.subr.mxu0 %v575
  %690 = vmatpush1.msra.mxu0 %v574
  %691 = vmatprep.subr.mxu0 %v583
  %692 = vmatpush1.msra.mxu0 %v582
  %693 = vmatprep.subr.mxu0 %v591
  %694 = vmatpush1.msra.mxu0 %v590
  %695 = vmatprep.subr.mxu0 0.0
  %696 = vmatpush1.msra.mxu0 0.0
  %697 = vmatprep.subr.mxu0 0.0
  %698 = vmatpush1.msra.mxu0 0.0
  %699 = vmatprep.subr.mxu0 0.0
  %700 = vmatpush1.msra.mxu0 0.0
  %701 = vmatprep.subr.mxu0 0.0
  %702 = vmatpush1.msra.mxu0 0.0
  %703 = vmatprep.subr.mxu0 0.0
  %704 = vmatpush1.msra.mxu0 0.0
  %705 = vmatprep.subr.mxu0 0.0
  %706 = vmatpush1.msra.mxu0 0.0
  %707 = vmatprep.subr.mxu0 0.0
  %708 = vmatpush1.msra.mxu0 0.0
  %709 = vmatprep.subr.mxu0 0.0
  %710 = vmatpush1.msra.mxu0 0.0
  %711 = vmatprep.subr.mxu0 0.0
  %712 = vmatpush1.msra.mxu0 0.0
  %713 = vmatprep.subr.mxu0 0.0
  %714 = vmatpush1.msra.mxu0 0.0
  %715 = vmatprep.subr.mxu0 0.0
  %716 = vmatpush1.msra.mxu0 0.0
  %717 = vmatprep.subr.mxu0 0.0
  %718 = vmatpush1.msra.mxu0 0.0
  %719 = vmatprep.subr.mxu0 0.0
  %720 = vmatpush1.msra.mxu0 0.0
  %721 = vmatprep.subr.mxu0 0.0
  %722 = vmatpush1.msra.mxu0 0.0
  %723 = vmatprep.subr.mxu0 0.0
  %724 = vmatpush1.msra.mxu0 0.0
  %725 = vmatprep.subr.mxu0 0.0
  %726 = vmatpush1.msra.mxu0 0.0
  %727 = vmatprep.subr.mxu0 0.0
  %728 = vmatpush1.msra.mxu0 0.0
  %729 = vmatprep.subr.mxu0 0.0
  %730 = vmatpush1.msra.mxu0 0.0
  %731 = vmatprep.subr.mxu0 0.0
  %732 = vmatpush1.msra.mxu0 0.0
  %733 = vmatprep.subr.mxu0 0.0
  %734 = vmatpush1.msra.mxu0 0.0
  %735 = vmatprep.subr.mxu0 0.0
  %736 = vmatpush1.msra.mxu0 0.0
  %737 = vmatprep.subr.mxu0 0.0
  %738 = vmatpush1.msra.mxu0 0.0
  %739 = vmatprep.subr.mxu0 0.0
  %740 = vmatpush1.msra.mxu0 0.0
  %741 = vmatprep.subr.mxu0 0.0
  %742 = vmatpush1.msra.mxu0 0.0
  %743 = vmatprep.mubr.f32.mxu0 0.0
  %744 = vmatmul.mubr.f32.gmra.mrb[0].mxu0 %v656
  %v745 = vpop.f32.mrb[0].mxu0
  %v746 = vadd.f32 %v617, %v745
  %v747 = vpop.f32.mrb[0].mxu0
  %v748 = vadd.f32 %v617, %v747
  %749 = vmatprep.mubr.f32.mxu0 0.0
  %750 = vmatmul.mubr.f32.gmra.mrb[0].mxu0 %v659
  %v751 = vpop.f32.mrb[0].mxu0
  %v752 = vadd.f32 %v622, %v751
  %v753 = vpop.f32.mrb[0].mxu0
  %v754 = vadd.f32 %v622, %v753
  %755 = vmatprep.mubr.f32.mxu0 0.0
  %756 = vmatmul.mubr.f32.gmra.mrb[0].mxu0 %v662
  %v757 = vpop.f32.mrb[0].mxu0
  %v758 = vadd.f32 %v627, %v757
  %v759 = vpop.f32.mrb[0].mxu0
  %v760 = vadd.f32 %v627, %v759
  %761 = vmatprep.mubr.f32.mxu0 0.0
  %762 = vmatmul.mubr.f32.gmra.mrb[0].mxu0 %v665
  %v763 = vpop.f32.mrb[0].mxu0
  %v764 = vadd.f32 %v632, %v763
  %v765 = vpop.f32.mrb[0].mxu0
  %v766 = vadd.f32 %v632, %v765
  %767 = vmatprep.mubr.f32.mxu0 0.0
  %768 = vmatmul.mubr.f32.gmra.mrb[0].mxu0 %v668
  %v769 = vpop.f32.mrb[0].mxu0
  %v770 = vadd.f32 %v637, %v769
  %v771 = vpop.f32.mrb[0].mxu0
  %v772 = vadd.f32 %v637, %v771
  %773 = vmatprep.mubr.f32.mxu0 0.0
  %774 = vmatmul.mubr.f32.gmra.mrb[0].mxu0 %v671
  %v775 = vpop.f32.mrb[0].mxu0
  %v776 = vadd.f32 %v642, %v775
  %v777 = vpop.f32.mrb[0].mxu0
  %v778 = vadd.f32 %v642, %v777
  %779 = vmatprep.mubr.f32.mxu0 0.0
  %780 = vmatmul.mubr.f32.gmra.mrb[0].mxu0 %v674
  %v781 = vpop.f32.mrb[0].mxu0
  %v782 = vadd.f32 %v647, %v781
  %v783 = vpop.f32.mrb[0].mxu0
  %v784 = vadd.f32 %v647, %v783
  %785 = vmatprep.mubr.f32.mxu0 0.0
  %786 = vmatmul.mubr.f32.gmra.mrb[0].mxu0 %v677
  %v787 = vpop.f32.mrb[0].mxu0
  %v788 = vadd.f32 %v652, %v787
  %v789 = vpop.f32.mrb[0].mxu0
  %v790 = vadd.f32 %v652, %v789
  %791 = vdwg.mxu0
  %792 = vmatprep.subr.mxu0 %v537
  %793 = vmatpush1.msra.mxu0 %v536
  %794 = vmatprep.subr.mxu0 %v545
  %795 = vmatpush1.msra.mxu0 %v544
  %796 = vmatprep.subr.mxu0 %v553
  %797 = vmatpush1.msra.mxu0 %v552
  %798 = vmatprep.subr.mxu0 %v561
  %799 = vmatpush1.msra.mxu0 %v560
  %800 = vmatprep.subr.mxu0 %v569
  %801 = vmatpush1.msra.mxu0 %v568
  %802 = vmatprep.subr.mxu0 %v577
  %803 = vmatpush1.msra.mxu0 %v576
  %804 = vmatprep.subr.mxu0 %v585
  %805 = vmatpush1.msra.mxu0 %v584
  %806 = vmatprep.subr.mxu0 %v593
  %807 = vmatpush1.msra.mxu0 %v592
  %808 = vmatprep.subr.mxu0 0.0
  %809 = vmatpush1.msra.mxu0 0.0
  %810 = vmatprep.subr.mxu0 0.0
  %811 = vmatpush1.msra.mxu0 0.0
  %812 = vmatprep.subr.mxu0 0.0
  %813 = vmatpush1.msra.mxu0 0.0
  %814 = vmatprep.subr.mxu0 0.0
  %815 = vmatpush1.msra.mxu0 0.0
  %816 = vmatprep.subr.mxu0 0.0
  %817 = vmatpush1.msra.mxu0 0.0
  %818 = vmatprep.subr.mxu0 0.0
  %819 = vmatpush1.msra.mxu0 0.0
  %820 = vmatprep.subr.mxu0 0.0
  %821 = vmatpush1.msra.mxu0 0.0
  %822 = vmatprep.subr.mxu0 0.0
  %823 = vmatpush1.msra.mxu0 0.0
  %824 = vmatprep.subr.mxu0 0.0
  %825 = vmatpush1.msra.mxu0 0.0
  %826 = vmatprep.subr.mxu0 0.0
  %827 = vmatpush1.msra.mxu0 0.0
  %828 = vmatprep.subr.mxu0 0.0
  %829 = vmatpush1.msra.mxu0 0.0
  %830 = vmatprep.subr.mxu0 0.0
  %831 = vmatpush1.msra.mxu0 0.0
  %832 = vmatprep.subr.mxu0 0.0
  %833 = vmatpush1.msra.mxu0 0.0
  %834 = vmatprep.subr.mxu0 0.0
  %835 = vmatpush1.msra.mxu0 0.0
  %836 = vmatprep.subr.mxu0 0.0
  %837 = vmatpush1.msra.mxu0 0.0
  %838 = vmatprep.subr.mxu0 0.0
  %839 = vmatpush1.msra.mxu0 0.0
  %840 = vmatprep.subr.mxu0 0.0
  %841 = vmatpush1.msra.mxu0 0.0
  %842 = vmatprep.subr.mxu0 0.0
  %843 = vmatpush1.msra.mxu0 0.0
  %844 = vmatprep.subr.mxu0 0.0
  %845 = vmatpush1.msra.mxu0 0.0
  %846 = vmatprep.subr.mxu0 0.0
  %847 = vmatpush1.msra.mxu0 0.0
  %848 = vmatprep.subr.mxu0 0.0
  %849 = vmatpush1.msra.mxu0 0.0
  %850 = vmatprep.subr.mxu0 0.0
  %851 = vmatpush1.msra.mxu0 0.0
  %852 = vmatprep.subr.mxu0 0.0
  %853 = vmatpush1.msra.mxu0 0.0
  %854 = vmatprep.subr.mxu0 0.0
  %855 = vmatpush1.msra.mxu0 0.0
  %856 = vmatprep.mubr.f32.mxu0 0.0
  %857 = vmatmul.mubr.f32.gmra.mrb[0].mxu0 %v656
  %v858 = vpop.f32.mrb[0].mxu0
  %v859 = vadd.f32 %v617, %v858
  %v860 = vpop.f32.mrb[0].mxu0
  %v861 = vadd.f32 %v617, %v860
  %862 = vmatprep.mubr.f32.mxu0 0.0
  %863 = vmatmul.mubr.f32.gmra.mrb[0].mxu0 %v659
  %v864 = vpop.f32.mrb[0].mxu0
  %v865 = vadd.f32 %v622, %v864
  %v866 = vpop.f32.mrb[0].mxu0
  %v867 = vadd.f32 %v622, %v866
  %868 = vmatprep.mubr.f32.mxu0 0.0
  %869 = vmatmul.mubr.f32.gmra.mrb[0].mxu0 %v662
  %v870 = vpop.f32.mrb[0].mxu0
  %v871 = vadd.f32 %v627, %v870
  %v872 = vpop.f32.mrb[0].mxu0
  %v873 = vadd.f32 %v627, %v872
  %874 = vmatprep.mubr.f32.mxu0 0.0
  %875 = vmatmul.mubr.f32.gmra.mrb[0].mxu0 %v665
  %v876 = vpop.f32.mrb[0].mxu0
  %v877 = vadd.f32 %v632, %v876
  %v878 = vpop.f32.mrb[0].mxu0
  %v879 = vadd.f32 %v632, %v878
  %880 = vmatprep.mubr.f32.mxu0 0.0
  %881 = vmatmul.mubr.f32.gmra.mrb[0].mxu0 %v668
  %v882 = vpop.f32.mrb[0].mxu0
  %v883 = vadd.f32 %v637, %v882
  %v884 = vpop.f32.mrb[0].mxu0
  %v885 = vadd.f32 %v637, %v884
  %886 = vmatprep.mubr.f32.mxu0 0.0
  %887 = vmatmul.mubr.f32.gmra.mrb[0].mxu0 %v671
  %v888 = vpop.f32.mrb[0].mxu0
  %v889 = vadd.f32 %v642, %v888
  %v890 = vpop.f32.mrb[0].mxu0
  %v891 = vadd.f32 %v642, %v890
  %892 = vmatprep.mubr.f32.mxu0 0.0
  %893 = vmatmul.mubr.f32.gmra.mrb[0].mxu0 %v674
  %v894 = vpop.f32.mrb[0].mxu0
  %v895 = vadd.f32 %v647, %v894
  %v896 = vpop.f32.mrb[0].mxu0
  %v897 = vadd.f32 %v647, %v896
  %898 = vmatprep.mubr.f32.mxu0 0.0
  %899 = vmatmul.mubr.f32.gmra.mrb[0].mxu0 %v677
  %v900 = vpop.f32.mrb[0].mxu0
  %v901 = vadd.f32 %v652, %v900
  %v902 = vpop.f32.mrb[0].mxu0
  %v903 = vadd.f32 %v652, %v902
  %904 = vdwg.mxu0
  %905 = vmatprep.subr.mxu0 %v539
  %906 = vmatpush1.msra.mxu0 %v538
  %907 = vmatprep.subr.mxu0 %v547
  %908 = vmatpush1.msra.mxu0 %v546
  %909 = vmatprep.subr.mxu0 %v555
  %910 = vmatpush1.msra.mxu0 %v554
  %911 = vmatprep.subr.mxu0 %v563
  %912 = vmatpush1.msra.mxu0 %v562
  %913 = vmatprep.subr.mxu0 %v571
  %914 = vmatpush1.msra.mxu0 %v570
  %915 = vmatprep.subr.mxu0 %v579
  %916 = vmatpush1.msra.mxu0 %v578
  %917 = vmatprep.subr.mxu0 %v587
  %918 = vmatpush1.msra.mxu0 %v586
  %919 = vmatprep.subr.mxu0 %v595
  %920 = vmatpush1.msra.mxu0 %v594
  %921 = vmatprep.subr.mxu0 0.0
  %922 = vmatpush1.msra.mxu0 0.0
  %923 = vmatprep.subr.mxu0 0.0
  %924 = vmatpush1.msra.mxu0 0.0
  %925 = vmatprep.subr.mxu0 0.0
  %926 = vmatpush1.msra.mxu0 0.0
  %927 = vmatprep.subr.mxu0 0.0
  %928 = vmatpush1.msra.mxu0 0.0
  %929 = vmatprep.subr.mxu0 0.0
  %930 = vmatpush1.msra.mxu0 0.0
  %931 = vmatprep.subr.mxu0 0.0
  %932 = vmatpush1.msra.mxu0 0.0
  %933 = vmatprep.subr.mxu0 0.0
  %934 = vmatpush1.msra.mxu0 0.0
  %935 = vmatprep.subr.mxu0 0.0
  %936 = vmatpush1.msra.mxu0 0.0
  %937 = vmatprep.subr.mxu0 0.0
  %938 = vmatpush1.msra.mxu0 0.0
  %939 = vmatprep.subr.mxu0 0.0
  %940 = vmatpush1.msra.mxu0 0.0
  %941 = vmatprep.subr.mxu0 0.0
  %942 = vmatpush1.msra.mxu0 0.0
  %943 = vmatprep.subr.mxu0 0.0
  %944 = vmatpush1.msra.mxu0 0.0
  %945 = vmatprep.subr.mxu0 0.0
  %946 = vmatpush1.msra.mxu0 0.0
  %947 = vmatprep.subr.mxu0 0.0
  %948 = vmatpush1.msra.mxu0 0.0
  %949 = vmatprep.subr.mxu0 0.0
  %950 = vmatpush1.msra.mxu0 0.0
  %951 = vmatprep.subr.mxu0 0.0
  %952 = vmatpush1.msra.mxu0 0.0
  %953 = vmatprep.subr.mxu0 0.0
  %954 = vmatpush1.msra.mxu0 0.0
  %955 = vmatprep.subr.mxu0 0.0
  %956 = vmatpush1.msra.mxu0 0.0
  %957 = vmatprep.subr.mxu0 0.0
  %958 = vmatpush1.msra.mxu0 0.0
  %959 = vmatprep.subr.mxu0 0.0
  %960 = vmatpush1.msra.mxu0 0.0
  %961 = vmatprep.subr.mxu0 0.0
  %962 = vmatpush1.msra.mxu0 0.0
  %963 = vmatprep.subr.mxu0 0.0
  %964 = vmatpush1.msra.mxu0 0.0
  %965 = vmatprep.subr.mxu0 0.0
  %966 = vmatpush1.msra.mxu0 0.0
  %967 = vmatprep.subr.mxu0 0.0
  %968 = vmatpush1.msra.mxu0 0.0
  %969 = vmatprep.mubr.f32.mxu0 0.0
  %970 = vmatmul.mubr.f32.gmra.mrb[0].mxu0 %v656
  %v971 = vpop.f32.mrb[0].mxu0
  %v972 = vadd.f32 %v617, %v971
  %v973 = vpop.f32.mrb[0].mxu0
  %v974 = vadd.f32 %v617, %v973
  %975 = vmatprep.mubr.f32.mxu0 0.0
  %976 = vmatmul.mubr.f32.gmra.mrb[0].mxu0 %v659
  %v977 = vpop.f32.mrb[0].mxu0
  %v978 = vadd.f32 %v622, %v977
  %v979 = vpop.f32.mrb[0].mxu0
  %v980 = vadd.f32 %v622, %v979
  %981 = vmatprep.mubr.f32.mxu0 0.0
  %982 = vmatmul.mubr.f32.gmra.mrb[0].mxu0 %v662
  %v983 = vpop.f32.mrb[0].mxu0
  %v984 = vadd.f32 %v627, %v983
  %v985 = vpop.f32.mrb[0].mxu0
  %v986 = vadd.f32 %v627, %v985
  %987 = vmatprep.mubr.f32.mxu0 0.0
  %988 = vmatmul.mubr.f32.gmra.mrb[0].mxu0 %v665
  %v989 = vpop.f32.mrb[0].mxu0
  %v990 = vadd.f32 %v632, %v989
  %v991 = vpop.f32.mrb[0].mxu0
  %v992 = vadd.f32 %v632, %v991
  %993 = vmatprep.mubr.f32.mxu0 0.0
  %994 = vmatmul.mubr.f32.gmra.mrb[0].mxu0 %v668
  %v995 = vpop.f32.mrb[0].mxu0
  %v996 = vadd.f32 %v637, %v995
  %v997 = vpop.f32.mrb[0].mxu0
  %v998 = vadd.f32 %v637, %v997
  %999 = vmatprep.mubr.f32.mxu0 0.0
  %1000 = vmatmul.mubr.f32.gmra.mrb[0].mxu0 %v671
  %v1001 = vpop.f32.mrb[0].mxu0
  %v1002 = vadd.f32 %v642, %v1001
  %v1003 = vpop.f32.mrb[0].mxu0
  %v1004 = vadd.f32 %v642, %v1003
  %1005 = vmatprep.mubr.f32.mxu0 0.0
  %1006 = vmatmul.mubr.f32.gmra.mrb[0].mxu0 %v674
  %v1007 = vpop.f32.mrb[0].mxu0
  %v1008 = vadd.f32 %v647, %v1007
  %v1009 = vpop.f32.mrb[0].mxu0
  %v1010 = vadd.f32 %v647, %v1009
  %1011 = vmatprep.mubr.f32.mxu0 0.0
  %1012 = vmatmul.mubr.f32.gmra.mrb[0].mxu0 %v677
  %v1013 = vpop.f32.mrb[0].mxu0
  %v1014 = vadd.f32 %v652, %v1013
  %v1015 = vpop.f32.mrb[0].mxu0
  %v1016 = vadd.f32 %v652, %v1015
  %1017 = vdwg.mxu0
  %1018 = vmatprep.subr.mxu0 %v541
  %1019 = vmatpush1.msra.mxu0 %v540
  %1020 = vmatprep.subr.mxu0 %v549
  %1021 = vmatpush1.msra.mxu0 %v548
  %1022 = vmatprep.subr.mxu0 %v557
  %1023 = vmatpush1.msra.mxu0 %v556
  %1024 = vmatprep.subr.mxu0 %v565
  %1025 = vmatpush1.msra.mxu0 %v564
  %1026 = vmatprep.subr.mxu0 %v573
  %1027 = vmatpush1.msra.mxu0 %v572
  %1028 = vmatprep.subr.mxu0 %v581
  %1029 = vmatpush1.msra.mxu0 %v580
  %1030 = vmatprep.subr.mxu0 %v589
  %1031 = vmatpush1.msra.mxu0 %v588
  %1032 = vmatprep.subr.mxu0 %v597
  %1033 = vmatpush1.msra.mxu0 %v596
  %1034 = vmatprep.subr.mxu0 0.0
  %1035 = vmatpush1.msra.mxu0 0.0
  %1036 = vmatprep.subr.mxu0 0.0
  %1037 = vmatpush1.msra.mxu0 0.0
  %1038 = vmatprep.subr.mxu0 0.0
  %1039 = vmatpush1.msra.mxu0 0.0
  %1040 = vmatprep.subr.mxu0 0.0
  %1041 = vmatpush1.msra.mxu0 0.0
  %1042 = vmatprep.subr.mxu0 0.0
  %1043 = vmatpush1.msra.mxu0 0.0
  %1044 = vmatprep.subr.mxu0 0.0
  %1045 = vmatpush1.msra.mxu0 0.0
  %1046 = vmatprep.subr.mxu0 0.0
  %1047 = vmatpush1.msra.mxu0 0.0
  %1048 = vmatprep.subr.mxu0 0.0
  %1049 = vmatpush1.msra.mxu0 0.0
  %1050 = vmatprep.subr.mxu0 0.0
  %1051 = vmatpush1.msra.mxu0 0.0
  %1052 = vmatprep.subr.mxu0 0.0
  %1053 = vmatpush1.msra.mxu0 0.0
  %1054 = vmatprep.subr.mxu0 0.0
  %1055 = vmatpush1.msra.mxu0 0.0
  %1056 = vmatprep.subr.mxu0 0.0
  %1057 = vmatpush1.msra.mxu0 0.0
  %1058 = vmatprep.subr.mxu0 0.0
  %1059 = vmatpush1.msra.mxu0 0.0
  %1060 = vmatprep.subr.mxu0 0.0
  %1061 = vmatpush1.msra.mxu0 0.0
  %1062 = vmatprep.subr.mxu0 0.0
  %1063 = vmatpush1.msra.mxu0 0.0
  %1064 = vmatprep.subr.mxu0 0.0
  %1065 = vmatpush1.msra.mxu0 0.0
  %1066 = vmatprep.subr.mxu0 0.0
  %1067 = vmatpush1.msra.mxu0 0.0
  %1068 = vmatprep.subr.mxu0 0.0
  %1069 = vmatpush1.msra.mxu0 0.0
  %1070 = vmatprep.subr.mxu0 0.0
  %1071 = vmatpush1.msra.mxu0 0.0
  %1072 = vmatprep.subr.mxu0 0.0
  %1073 = vmatpush1.msra.mxu0 0.0
  %1074 = vmatprep.subr.mxu0 0.0
  %1075 = vmatpush1.msra.mxu0 0.0
  %1076 = vmatprep.subr.mxu0 0.0
  %1077 = vmatpush1.msra.mxu0 0.0
  %1078 = vmatprep.subr.mxu0 0.0
  %1079 = vmatpush1.msra.mxu0 0.0
  %1080 = vmatprep.subr.mxu0 0.0
  %1081 = vmatpush1.msra.mxu0 0.0
  %1082 = vmatprep.mubr.f32.mxu0 0.0
  %1083 = vmatmul.mubr.f32.gmra.mrb[0].mxu0 %v656
  %v1084 = vpop.f32.mrb[0].mxu0
  %v1085 = vadd.f32 %v617, %v1084
  %v1086 = vpop.f32.mrb[0].mxu0
  %v1087 = vadd.f32 %v617, %v1086
  %1088 = vmatprep.mubr.f32.mxu0 0.0
  %1089 = vmatmul.mubr.f32.gmra.mrb[0].mxu0 %v659
  %v1090 = vpop.f32.mrb[0].mxu0
  %v1091 = vadd.f32 %v622, %v1090
  %v1092 = vpop.f32.mrb[0].mxu0
  %v1093 = vadd.f32 %v622, %v1092
  %1094 = vmatprep.mubr.f32.mxu0 0.0
  %1095 = vmatmul.mubr.f32.gmra.mrb[0].mxu0 %v662
  %v1096 = vpop.f32.mrb[0].mxu0
  %v1097 = vadd.f32 %v627, %v1096
  %v1098 = vpop.f32.mrb[0].mxu0
  %v1099 = vadd.f32 %v627, %v1098
  %1100 = vmatprep.mubr.f32.mxu0 0.0
  %1101 = vmatmul.mubr.f32.gmra.mrb[0].mxu0 %v665
  %v1102 = vpop.f32.mrb[0].mxu0
  %v1103 = vadd.f32 %v632, %v1102
  %v1104 = vpop.f32.mrb[0].mxu0
  %v1105 = vadd.f32 %v632, %v1104
  %1106 = vmatprep.mubr.f32.mxu0 0.0
  %1107 = vmatmul.mubr.f32.gmra.mrb[0].mxu0 %v668
  %v1108 = vpop.f32.mrb[0].mxu0
  %v1109 = vadd.f32 %v637, %v1108
  %v1110 = vpop.f32.mrb[0].mxu0
  %v1111 = vadd.f32 %v637, %v1110
  %1112 = vmatprep.mubr.f32.mxu0 0.0
  %1113 = vmatmul.mubr.f32.gmra.mrb[0].mxu0 %v671
  %v1114 = vpop.f32.mrb[0].mxu0
  %v1115 = vadd.f32 %v642, %v1114
  %v1116 = vpop.f32.mrb[0].mxu0
  %v1117 = vadd.f32 %v642, %v1116
  %1118 = vmatprep.mubr.f32.mxu0 0.0
  %1119 = vmatmul.mubr.f32.gmra.mrb[0].mxu0 %v674
  %v1120 = vpop.f32.mrb[0].mxu0
  %v1121 = vadd.f32 %v647, %v1120
  %v1122 = vpop.f32.mrb[0].mxu0
  %v1123 = vadd.f32 %v647, %v1122
  %1124 = vmatprep.mubr.f32.mxu0 0.0
  %1125 = vmatmul.mubr.f32.gmra.mrb[0].mxu0 %v677
  %v1126 = vpop.f32.mrb[0].mxu0
  %v1127 = vadd.f32 %v652, %v1126
  %v1128 = vpop.f32.mrb[0].mxu0
  %v1129 = vadd.f32 %v652, %v1128
  %1130 = vdwg.mxu0
  %v1131 = vtanh.pop %v746
  %v1132 = vtanh.pop %v748
  %v1133 = vtanh.pop %v859
  %v1134 = vtanh.pop %v861
  %v1135 = vtanh.pop %v972
  %v1136 = vtanh.pop %v974
  %v1137 = vtanh.pop %v1085
  %v1138 = vtanh.pop %v1087
  %v1139 = vtanh.pop %v752
  %v1140 = vtanh.pop %v754
  %v1141 = vtanh.pop %v865
  %v1142 = vtanh.pop %v867
  %v1143 = vtanh.pop %v978
  %v1144 = vtanh.pop %v980
  %v1145 = vtanh.pop %v1091
  %v1146 = vtanh.pop %v1093
  %v1147 = vtanh.pop %v758
  %v1148 = vtanh.pop %v760
  %v1149 = vtanh.pop %v871
  %v1150 = vtanh.pop %v873
  %v1151 = vtanh.pop %v984
  %v1152 = vtanh.pop %v986
  %v1153 = vtanh.pop %v1097
  %v1154 = vtanh.pop %v1099
  %v1155 = vtanh.pop %v764
  %v1156 = vtanh.pop %v766
  %v1157 = vtanh.pop %v877
  %v1158 = vtanh.pop %v879
  %v1159 = vtanh.pop %v990
  %v1160 = vtanh.pop %v992
  %v1161 = vtanh.pop %v1103
  %v1162 = vtanh.pop %v1105
  %v1163 = vtanh.pop %v770
  %v1164 = vtanh.pop %v772
  %v1165 = vtanh.pop %v883
  %v1166 = vtanh.pop %v885
  %v1167 = vtanh.pop %v996
  %v1168 = vtanh.pop %v998
  %v1169 = vtanh.pop %v1109
  %v1170 = vtanh.pop %v1111
  %v1171 = vtanh.pop %v776
  %v1172 = vtanh.pop %v778
  %v1173 = vtanh.pop %v889
  %v1174 = vtanh.pop %v891
  %v1175 = vtanh.pop %v1002
  %v1176 = vtanh.pop %v1004
  %v1177 = vtanh.pop %v1115
  %v1178 = vtanh.pop %v1117
  %v1179 = vtanh.pop %v782
  %v1180 = vtanh.pop %v784
  %v1181 = vtanh.pop %v895
  %v1182 = vtanh.pop %v897
  %v1183 = vtanh.pop %v1008
  %v1184 = vtanh.pop %v1010
  %v1185 = vtanh.pop %v1121
  %v1186 = vtanh.pop %v1123
  %v1187 = vtanh.pop %v788
  %v1188 = vtanh.pop %v790
  %v1189 = vtanh.pop %v901
  %v1190 = vtanh.pop %v903
  %v1191 = vtanh.pop %v1014
  %v1192 = vtanh.pop %v1016
  %v1193 = vtanh.pop %v1127
  %v1194 = vtanh.pop %v1129
  %v1195 = vld [vmem:[%s4] sm:$0x1]
  %v1197 = vsel %vm654, %v1195, 0
  %1199 = vmatprep.subr.mxu0 %v1132
  %1200 = vmatpush1.msra.mxu0 %v1131
  %1201 = vmatprep.subr.mxu0 %v1140
  %1202 = vmatpush1.msra.mxu0 %v1139
  %1203 = vmatprep.subr.mxu0 %v1148
  %1204 = vmatpush1.msra.mxu0 %v1147
  %1205 = vmatprep.subr.mxu0 %v1156
  %1206 = vmatpush1.msra.mxu0 %v1155
  %1207 = vmatprep.subr.mxu0 %v1164
  %1208 = vmatpush1.msra.mxu0 %v1163
  %1209 = vmatprep.subr.mxu0 %v1172
  %1210 = vmatpush1.msra.mxu0 %v1171
  %1211 = vmatprep.subr.mxu0 %v1180
  %1212 = vmatpush1.msra.mxu0 %v1179
  %1213 = vmatprep.subr.mxu0 %v1188
  %1214 = vmatpush1.msra.mxu0 %v1187
  %1215 = vmatprep.subr.mxu0 0.0
  %1216 = vmatpush1.msra.mxu0 0.0
  %1217 = vmatprep.subr.mxu0 0.0
  %1218 = vmatpush1.msra.mxu0 0.0
  %1219 = vmatprep.subr.mxu0 0.0
  %1220 = vmatpush1.msra.mxu0 0.0
  %1221 = vmatprep.subr.mxu0 0.0
  %1222 = vmatpush1.msra.mxu0 0.0
  %1223 = vmatprep.subr.mxu0 0.0
  %1224 = vmatpush1.msra.mxu0 0.0
  %1225 = vmatprep.subr.mxu0 0.0
  %1226 = vmatpush1.msra.mxu0 0.0
  %1227 = vmatprep.subr.mxu0 0.0
  %1228 = vmatpush1.msra.mxu0 0.0
  %1229 = vmatprep.subr.mxu0 0.0
  %1230 = vmatpush1.msra.mxu0 0.0
  %1231 = vmatprep.subr.mxu0 0.0
  %1232 = vmatpush1.msra.mxu0 0.0
  %1233 = vmatprep.subr.mxu0 0.0
  %1234 = vmatpush1.msra.mxu0 0.0
  %1235 = vmatprep.subr.mxu0 0.0
  %1236 = vmatpush1.msra.mxu0 0.0
  %1237 = vmatprep.subr.mxu0 0.0
  %1238 = vmatpush1.msra.mxu0 0.0
  %1239 = vmatprep.subr.mxu0 0.0
  %1240 = vmatpush1.msra.mxu0 0.0
  %1241 = vmatprep.subr.mxu0 0.0
  %1242 = vmatpush1.msra.mxu0 0.0
  %1243 = vmatprep.subr.mxu0 0.0
  %1244 = vmatpush1.msra.mxu0 0.0
  %1245 = vmatprep.subr.mxu0 0.0
  %1246 = vmatpush1.msra.mxu0 0.0
  %1247 = vmatprep.subr.mxu0 0.0
  %1248 = vmatpush1.msra.mxu0 0.0
  %1249 = vmatprep.subr.mxu0 0.0
  %1250 = vmatpush1.msra.mxu0 0.0
  %1251 = vmatprep.subr.mxu0 0.0
  %1252 = vmatpush1.msra.mxu0 0.0
  %1253 = vmatprep.subr.mxu0 0.0
  %1254 = vmatpush1.msra.mxu0 0.0
  %1255 = vmatprep.subr.mxu0 0.0
  %1256 = vmatpush1.msra.mxu0 0.0
  %1257 = vmatprep.subr.mxu0 0.0
  %1258 = vmatpush1.msra.mxu0 0.0
  %1259 = vmatprep.subr.mxu0 0.0
  %1260 = vmatpush1.msra.mxu0 0.0
  %1261 = vmatprep.subr.mxu0 0.0
  %1262 = vmatpush1.msra.mxu0 0.0
  %1263 = vmatprep.mubr.f32.mxu0 0.0
  %1264 = vmatmul.mubr.f32.gmra.mrb[0].mxu0 %v1197
  %v1265 = vpop.f32.mrb[0].mxu0
  %v1266 = vadd.f32 0.0, %v1265
  %v1267 = vpop.f32.mrb[0].mxu0
  %v1268 = vadd.f32 0.0, %v1267
  %1269 = vdwg.mxu0
  %1270 = vmatprep.subr.mxu0 %v1134
  %1271 = vmatpush1.msra.mxu0 %v1133
  %1272 = vmatprep.subr.mxu0 %v1142
  %1273 = vmatpush1.msra.mxu0 %v1141
  %1274 = vmatprep.subr.mxu0 %v1150
  %1275 = vmatpush1.msra.mxu0 %v1149
  %1276 = vmatprep.subr.mxu0 %v1158
  %1277 = vmatpush1.msra.mxu0 %v1157
  %1278 = vmatprep.subr.mxu0 %v1166
  %1279 = vmatpush1.msra.mxu0 %v1165
  %1280 = vmatprep.subr.mxu0 %v1174
  %1281 = vmatpush1.msra.mxu0 %v1173
  %1282 = vmatprep.subr.mxu0 %v1182
  %1283 = vmatpush1.msra.mxu0 %v1181
  %1284 = vmatprep.subr.mxu0 %v1190
  %1285 = vmatpush1.msra.mxu0 %v1189
  %1286 = vmatprep.subr.mxu0 0.0
  %1287 = vmatpush1.msra.mxu0 0.0
  %1288 = vmatprep.subr.mxu0 0.0
  %1289 = vmatpush1.msra.mxu0 0.0
  %1290 = vmatprep.subr.mxu0 0.0
  %1291 = vmatpush1.msra.mxu0 0.0
  %1292 = vmatprep.subr.mxu0 0.0
  %1293 = vmatpush1.msra.mxu0 0.0
  %1294 = vmatprep.subr.mxu0 0.0
  %1295 = vmatpush1.msra.mxu0 0.0
  %1296 = vmatprep.subr.mxu0 0.0
  %1297 = vmatpush1.msra.mxu0 0.0
  %1298 = vmatprep.subr.mxu0 0.0
  %1299 = vmatpush1.msra.mxu0 0.0
  %1300 = vmatprep.subr.mxu0 0.0
  %1301 = vmatpush1.msra.mxu0 0.0
  %1302 = vmatprep.subr.mxu0 0.0
  %1303 = vmatpush1.msra.mxu0 0.0
  %1304 = vmatprep.subr.mxu0 0.0
  %1305 = vmatpush1.msra.mxu0 0.0
  %1306 = vmatprep.subr.mxu0 0.0
  %1307 = vmatpush1.msra.mxu0 0.0
  %1308 = vmatprep.subr.mxu0 0.0
  %1309 = vmatpush1.msra.mxu0 0.0
  %1310 = vmatprep.subr.mxu0 0.0
  %1311 = vmatpush1.msra.mxu0 0.0
  %1312 = vmatprep.subr.mxu0 0.0
  %1313 = vmatpush1.msra.mxu0 0.0
  %1314 = vmatprep.subr.mxu0 0.0
  %1315 = vmatpush1.msra.mxu0 0.0
  %1316 = vmatprep.subr.mxu0 0.0
  %1317 = vmatpush1.msra.mxu0 0.0
  %1318 = vmatprep.subr.mxu0 0.0
  %1319 = vmatpush1.msra.mxu0 0.0
  %1320 = vmatprep.subr.mxu0 0.0
  %1321 = vmatpush1.msra.mxu0 0.0
  %1322 = vmatprep.subr.mxu0 0.0
  %1323 = vmatpush1.msra.mxu0 0.0
  %1324 = vmatprep.subr.mxu0 0.0
  %1325 = vmatpush1.msra.mxu0 0.0
  %1326 = vmatprep.subr.mxu0 0.0
  %1327 = vmatpush1.msra.mxu0 0.0
  %1328 = vmatprep.subr.mxu0 0.0
  %1329 = vmatpush1.msra.mxu0 0.0
  %1330 = vmatprep.subr.mxu0 0.0
  %1331 = vmatpush1.msra.mxu0 0.0
  %1332 = vmatprep.subr.mxu0 0.0
  %1333 = vmatpush1.msra.mxu0 0.0
  %1334 = vmatprep.mubr.f32.mxu0 0.0
  %1335 = vmatmul.mubr.f32.gmra.mrb[0].mxu0 %v1197
  %v1336 = vpop.f32.mrb[0].mxu0
  %v1337 = vadd.f32 0.0, %v1336
  %v1338 = vpop.f32.mrb[0].mxu0
  %v1339 = vadd.f32 0.0, %v1338
  %1340 = vdwg.mxu0
  %1341 = vmatprep.subr.mxu0 %v1136
  %1342 = vmatpush1.msra.mxu0 %v1135
  %1343 = vmatprep.subr.mxu0 %v1144
  %1344 = vmatpush1.msra.mxu0 %v1143
  %1345 = vmatprep.subr.mxu0 %v1152
  %1346 = vmatpush1.msra.mxu0 %v1151
  %1347 = vmatprep.subr.mxu0 %v1160
  %1348 = vmatpush1.msra.mxu0 %v1159
  %1349 = vmatprep.subr.mxu0 %v1168
  %1350 = vmatpush1.msra.mxu0 %v1167
  %1351 = vmatprep.subr.mxu0 %v1176
  %1352 = vmatpush1.msra.mxu0 %v1175
  %1353 = vmatprep.subr.mxu0 %v1184
  %1354 = vmatpush1.msra.mxu0 %v1183
  %1355 = vmatprep.subr.mxu0 %v1192
  %1356 = vmatpush1.msra.mxu0 %v1191
  %1357 = vmatprep.subr.mxu0 0.0
  %1358 = vmatpush1.msra.mxu0 0.0
  %1359 = vmatprep.subr.mxu0 0.0
  %1360 = vmatpush1.msra.mxu0 0.0
  %1361 = vmatprep.subr.mxu0 0.0
  %1362 = vmatpush1.msra.mxu0 0.0
  %1363 = vmatprep.subr.mxu0 0.0
  %1364 = vmatpush1.msra.mxu0 0.0
  %1365 = vmatprep.subr.mxu0 0.0
  %1366 = vmatpush1.msra.mxu0 0.0
  %1367 = vmatprep.subr.mxu0 0.0
  %1368 = vmatpush1.msra.mxu0 0.0
  %1369 = vmatprep.subr.mxu0 0.0
  %1370 = vmatpush1.msra.mxu0 0.0
  %1371 = vmatprep.subr.mxu0 0.0
  %1372 = vmatpush1.msra.mxu0 0.0
  %1373 = vmatprep.subr.mxu0 0.0
  %1374 = vmatpush1.msra.mxu0 0.0
  %1375 = vmatprep.subr.mxu0 0.0
  %1376 = vmatpush1.msra.mxu0 0.0
  %1377 = vmatprep.subr.mxu0 0.0
  %1378 = vmatpush1.msra.mxu0 0.0
  %1379 = vmatprep.subr.mxu0 0.0
  %1380 = vmatpush1.msra.mxu0 0.0
  %1381 = vmatprep.subr.mxu0 0.0
  %1382 = vmatpush1.msra.mxu0 0.0
  %1383 = vmatprep.subr.mxu0 0.0
  %1384 = vmatpush1.msra.mxu0 0.0
  %1385 = vmatprep.subr.mxu0 0.0
  %1386 = vmatpush1.msra.mxu0 0.0
  %1387 = vmatprep.subr.mxu0 0.0
  %1388 = vmatpush1.msra.mxu0 0.0
  %1389 = vmatprep.subr.mxu0 0.0
  %1390 = vmatpush1.msra.mxu0 0.0
  %1391 = vmatprep.subr.mxu0 0.0
  %1392 = vmatpush1.msra.mxu0 0.0
  %1393 = vmatprep.subr.mxu0 0.0
  %1394 = vmatpush1.msra.mxu0 0.0
  %1395 = vmatprep.subr.mxu0 0.0
  %1396 = vmatpush1.msra.mxu0 0.0
  %1397 = vmatprep.subr.mxu0 0.0
  %1398 = vmatpush1.msra.mxu0 0.0
  %1399 = vmatprep.subr.mxu0 0.0
  %1400 = vmatpush1.msra.mxu0 0.0
  %1401 = vmatprep.subr.mxu0 0.0
  %1402 = vmatpush1.msra.mxu0 0.0
  %1403 = vmatprep.subr.mxu0 0.0
  %1404 = vmatpush1.msra.mxu0 0.0
  %1405 = vmatprep.mubr.f32.mxu0 0.0
  %1406 = vmatmul.mubr.f32.gmra.mrb[0].mxu0 %v1197
  %v1407 = vpop.f32.mrb[0].mxu0
  %v1408 = vadd.f32 0.0, %v1407
  %v1409 = vpop.f32.mrb[0].mxu0
  %v1410 = vadd.f32 0.0, %v1409
  %1411 = vdwg.mxu0
  %1412 = vmatprep.subr.mxu0 %v1138
  %1413 = vmatpush1.msra.mxu0 %v1137
  %1414 = vmatprep.subr.mxu0 %v1146
  %1415 = vmatpush1.msra.mxu0 %v1145
  %1416 = vmatprep.subr.mxu0 %v1154
  %1417 = vmatpush1.msra.mxu0 %v1153
  %1418 = vmatprep.subr.mxu0 %v1162
  %1419 = vmatpush1.msra.mxu0 %v1161
  %1420 = vmatprep.subr.mxu0 %v1170
  %1421 = vmatpush1.msra.mxu0 %v1169
  %1422 = vmatprep.subr.mxu0 %v1178
  %1423 = vmatpush1.msra.mxu0 %v1177
  %1424 = vmatprep.subr.mxu0 %v1186
  %1425 = vmatpush1.msra.mxu0 %v1185
  %1426 = vmatprep.subr.mxu0 %v1194
  %1427 = vmatpush1.msra.mxu0 %v1193
  %1428 = vmatprep.subr.mxu0 0.0
  %1429 = vmatpush1.msra.mxu0 0.0
  %1430 = vmatprep.subr.mxu0 0.0
  %1431 = vmatpush1.msra.mxu0 0.0
  %1432 = vmatprep.subr.mxu0 0.0
  %1433 = vmatpush1.msra.mxu0 0.0
  %1434 = vmatprep.subr.mxu0 0.0
  %1435 = vmatpush1.msra.mxu0 0.0
  %1436 = vmatprep.subr.mxu0 0.0
  %1437 = vmatpush1.msra.mxu0 0.0
  %1438 = vmatprep.subr.mxu0 0.0
  %1439 = vmatpush1.msra.mxu0 0.0
  %1440 = vmatprep.subr.mxu0 0.0
  %1441 = vmatpush1.msra.mxu0 0.0
  %1442 = vmatprep.subr.mxu0 0.0
  %1443 = vmatpush1.msra.mxu0 0.0
  %1444 = vmatprep.subr.mxu0 0.0
  %1445 = vmatpush1.msra.mxu0 0.0
  %1446 = vmatprep.subr.mxu0 0.0
  %1447 = vmatpush1.msra.mxu0 0.0
  %1448 = vmatprep.subr.mxu0 0.0
  %1449 = vmatpush1.msra.mxu0 0.0
  %1450 = vmatprep.subr.mxu0 0.0
  %1451 = vmatpush1.msra.mxu0 0.0
  %1452 = vmatprep.subr.mxu0 0.0
  %1453 = vmatpush1.msra.mxu0 0.0
  %1454 = vmatprep.subr.mxu0 0.0
  %1455 = vmatpush1.msra.mxu0 0.0
  %1456 = vmatprep.subr.mxu0 0.0
  %1457 = vmatpush1.msra.mxu0 0.0
  %1458 = vmatprep.subr.mxu0 0.0
  %1459 = vmatpush1.msra.mxu0 0.0
  %1460 = vmatprep.subr.mxu0 0.0
  %1461 = vmatpush1.msra.mxu0 0.0
  %1462 = vmatprep.subr.mxu0 0.0
  %1463 = vmatpush1.msra.mxu0 0.0
  %1464 = vmatprep.subr.mxu0 0.0
  %1465 = vmatpush1.msra.mxu0 0.0
  %1466 = vmatprep.subr.mxu0 0.0
  %1467 = vmatpush1.msra.mxu0 0.0
  %1468 = vmatprep.subr.mxu0 0.0
  %1469 = vmatpush1.msra.mxu0 0.0
  %1470 = vmatprep.subr.mxu0 0.0
  %1471 = vmatpush1.msra.mxu0 0.0
  %1472 = vmatprep.subr.mxu0 0.0
  %1473 = vmatpush1.msra.mxu0 0.0
  %1474 = vmatprep.subr.mxu0 0.0
  %1475 = vmatpush1.msra.mxu0 0.0
  %1476 = vmatprep.mubr.f32.mxu0 0.0
  %1477 = vmatmul.mubr.f32.gmra.mrb[0].mxu0 %v1197
  %v1478 = vpop.f32.mrb[0].mxu0
  %v1479 = vadd.f32 0.0, %v1478
  %v1480 = vpop.f32.mrb[0].mxu0
  %v1481 = vadd.f32 0.0, %v1480
  %1482 = vdwg.mxu0
  %v1491 = vcombine.low %v1266, %v1268
  %v1492 = vcombine.low %v1337, %v1339
  %v1493 = vcombine.low %v1408, %v1410
  %v1494 = vcombine.low %v1479, %v1481
  %v1496 = vunpack.c.l.s4 1966171168
  %v1497 = vunpack.c.0.s8 %v1496
  %v1498 = vlaneseq
  %v1499 = vshrl.u32 %v1498, 7
  %v1500 = vsub.s32 %v1497, %v1499
  %v1501 = vrot.slane %v1491, %v1500
  %v1503 = vunpack.c.l.s4 1966171168
  %v1504 = vunpack.c.0.s8 %v1503
  %v1505 = vlaneseq
  %v1506 = vshrl.u32 %v1505, 7
  %v1507 = vsub.s32 %v1504, %v1506
  %v1508 = vrot.slane %v1492, %v1507
  %v1510 = vunpack.c.l.s4 1966171168
  %v1511 = vunpack.c.0.s8 %v1510
  %v1512 = vlaneseq
  %v1513 = vshrl.u32 %v1512, 7
  %v1514 = vsub.s32 %v1511, %v1513
  %v1515 = vrot.slane %v1493, %v1514
  %v1517 = vunpack.c.l.s4 1966171168
  %v1518 = vunpack.c.0.s8 %v1517
  %v1519 = vlaneseq
  %v1520 = vshrl.u32 %v1519, 7
  %v1521 = vsub.s32 %v1518, %v1520
  %v1522 = vrot.slane %v1494, %v1521
  %v1523 = vcombine.low %v1501, %v1508
  %v1524 = vcombine.low %v1515, %v1522
  %v1526 = vunpack.c.l.s4 1966171168
  %v1527 = vunpack.c.0.s8 %v1526
  %v1528 = vlaneseq
  %v1529 = vshrl.u32 %v1528, 7
  %v1530 = vsub.s32 %v1527, %v1529
  %v1531 = vrot.slane %v1523, %v1530
  %v1533 = vunpack.c.l.s4 1966171168
  %v1534 = vunpack.c.0.s8 %v1533
  %v1535 = vlaneseq
  %v1536 = vshrl.u32 %v1535, 7
  %v1537 = vsub.s32 %v1534, %v1536
  %v1538 = vrot.slane %v1524, %v1537
  %v1539 = vcombine.low %v1531, %v1538
  %1541 = vst [vmem:[%s5] sm:$0xff] %v1539
  // Predicated region
  $region22: #{pinn_forward.1} parent=0 // pred_check
    _
  $region23: #{pinn_forward.1} parent=0 // pred_check_branch
    %1543 = sbr.rel (0) target = $region25
  $region24: #{pinn_forward.1} parent=0 // pred_region
    _
  $region25: #{pinn_forward.1} parent=0 // pred_fallthru
    _
  // Predicated region
  $region26: #{pinn_forward.1} parent=0 // pred_check
    _
  $region27: #{pinn_forward.1} parent=0 // pred_check_branch
    %1545 = sbr.rel (0) target = $region29
  $region28: #{pinn_forward.1} parent=0 // pred_region
    _
  $region29: #{pinn_forward.1} parent=0 // pred_fallthru
    _

</llo_original>
